<compile_context>
chip_gen: v6e
topology: v6e:2x2x1
jax: 0.10.0
libtpu: 0.0.40
codegen_flags: <defaults>
</compile_context>

<pallas_src>
import functools

import jax
import jax.numpy as jnp
import numpy as np
from jax import lax
from jax.experimental import pallas as pl
from jax.experimental.pallas import tpu as pltpu

EPS = 1e-6


# ----------------------------------------------------------------------------
# Pallas kernel: all PHASE unfolding layers fused; one grid step per phase.
# ----------------------------------------------------------------------------
def _fill_taps(t_ref, img, mask_ref, img_w):
    """Write the 9 shifted+masked copies of `img` (im2col rows) into t_ref.

    img: (Cin, BN) f32, flattened as [b*H*W + h*W + w] along lanes.
    t_ref: VMEM (9*Cin, BN) f32; row block k*Cin:(k+1)*Cin is tap k = kh*3+kw.
    """
    cin, bn = img.shape
    for kh in range(3):
        for kw in range(3):
            k = kh * 3 + kw
            off = (kh - 1) * img_w + (kw - 1)          # flat-index tap offset
            if off == 0:
                t = img                                 # center tap, no mask
            else:
                # result[:, p] = img[:, p + off]  (wraps are killed by mask)
                t = pltpu.roll(img, (-off) % bn, axis=1)
                t = t * mask_ref[pl.ds(k, 1), :]
            t_ref[pl.ds(k * cin, cin), :] = t


def _e2e_kernel(step_ref,          # SMEM (PHASE,)
                x0_ref,            # VMEM (C, BN)   initial x (read at phase 0)
                y_ref,             # VMEM (1, BN)   measurement
                phi_ref,           # VMEM (C, BN)   Phi tiled over batch
                ips_ref,           # VMEM (1, BN)   1 / (Phi Phi^T + eps)
                mask_ref,          # VMEM (9, BN)   conv boundary masks
                w1_ref,            # VMEM (F, 9C)   bf16 packed conv1 weights
                b1_ref,            # VMEM (F, 1)    f32
                w2_ref,            # VMEM (C, 9F)   bf16 packed conv2 weights
                b2_ref,            # VMEM (C, 1)    f32
                layers_ref,        # VMEM out (C, BN)  this phase's x
                sym_ref,           # VMEM out (C, BN)  this phase's residual
                x_state,           # VMEM scratch (C, BN)  resident across phases
                t1_ref,            # VMEM scratch (9C, BN) conv1 tap matrix
                t2_ref,            # VMEM scratch (9F, BN) conv2 tap matrix
                *, img_w):
    p = pl.program_id(0)

    @pl.when(p == 0)
    def _():
        x_state[...] = x0_ref[...]

    step = step_ref[p]
    x = x_state[...]
    phi = phi_ref[...]

    # ---- gradient ("GAP") step --------------------------------------------
    yb = jnp.sum(phi * x, axis=0, keepdims=True)          # (1, BN)  Phi.x
    resid = (yb - y_ref[...]) * ips_ref[...]               # (1, BN)
    r = x - step * (phi * resid)                           # (C, BN)

    # ---- conv1 (3x3, C -> F, SAME) + ReLU: one MXU matmul over 9C taps -----
    _fill_taps(t1_ref, r, mask_ref, img_w)
    feat = jnp.dot(w1_ref[...], t1_ref[...].astype(jnp.bfloat16),
                   preferred_element_type=jnp.float32) + b1_ref[...]
    feat = jnp.maximum(feat, 0.0)                          # (F, BN)

    # ---- conv2 (3x3, F -> C, SAME): one MXU matmul over 9F taps ------------
    _fill_taps(t2_ref, feat, mask_ref, img_w)
    delta = jnp.dot(w2_ref[...], t2_ref[...].astype(jnp.bfloat16),
                    preferred_element_type=jnp.float32) + b2_ref[...]  # (C, BN)

    x_new = r + delta
    x_state[...] = x_new                                   # carry to next phase
    layers_ref[...] = x_new
    sym_ref[...] = delta


# ----------------------------------------------------------------------------
# Wrapper: layout plumbing + single fused pallas_call
# ----------------------------------------------------------------------------
def _make_masks(B, H, W):
    """(9, B*H*W) validity masks for the 9 conv taps in flat layout."""
    HW = H * W
    n = np.arange(B * HW) % HW
    h, w = n // W, n % W
    m = np.zeros((9, B * HW), np.float32)
    for kh in range(3):
        for kw in range(3):
            ok = ((h + kh - 1 >= 0) & (h + kh - 1 < H) &
                  (w + kw - 1 >= 0) & (w + kw - 1 < W))
            m[kh * 3 + kw] = ok.astype(np.float32)
    return m


def pack_params(layer_params):
    """Hoisted (once per model) weight packing: tap-major (Cout, 9*Cin) bf16."""
    steps = jnp.stack([p[0][0] for p in layer_params]).astype(jnp.float32)
    w1 = jnp.stack([jnp.transpose(p[1], (0, 2, 3, 1)).reshape(p[1].shape[0], -1)
                    for p in layer_params]).astype(jnp.bfloat16)   # (PHASE,F,9C)
    b1 = jnp.stack([p[2] for p in layer_params]).astype(jnp.float32)
    w2 = jnp.stack([jnp.transpose(p[3], (0, 2, 3, 1)).reshape(p[3].shape[0], -1)
                    for p in layer_params]).astype(jnp.bfloat16)   # (PHASE,C,9F)
    b2 = jnp.stack([p[4] for p in layer_params]).astype(jnp.float32)
    return steps, w1, b1, w2, b2


@jax.jit
def end2end_forward(x, y, phi, packed):
    """Equivalent of End2end.forward -> (layers, symmetric)."""
    B, C, H, W = x.shape
    HW, BN = H * W, B * H * W
    steps, w1p, b1, w2p, b2 = packed
    PHASE, F = w1p.shape[0], w1p.shape[1]

    # Lane-dense (rows, B*H*W) layout.
    x_flat = jnp.transpose(x, (1, 0, 2, 3)).reshape(C, BN)
    y_flat = y.reshape(1, BN)
    phi_flat = phi.reshape(C, HW)
    phi_t = jnp.tile(phi_flat, (1, B))
    phisum = jnp.sum(phi_flat * phi_flat, axis=0, keepdims=True)   # diag(Phi Phi^T)
    ips_t = jnp.tile(1.0 / (phisum + EPS), (1, B))
    masks = jnp.asarray(_make_masks(B, H, W))

    kernel = functools.partial(_e2e_kernel, img_w=W)

    in_specs = [
        pl.BlockSpec(memory_space=pltpu.MemorySpace.SMEM),        # steps
        pl.BlockSpec((C, BN), lambda p: (0, 0)),                  # x0
        pl.BlockSpec((1, BN), lambda p: (0, 0)),                  # y
        pl.BlockSpec((C, BN), lambda p: (0, 0)),                  # phi (batch-tiled)
        pl.BlockSpec((1, BN), lambda p: (0, 0)),                  # 1/(Phi Phi^T + eps)
        pl.BlockSpec((9, BN), lambda p: (0, 0)),                  # conv masks
        pl.BlockSpec((None, F, 9 * C), lambda p: (p, 0, 0)),      # w1 packed
        pl.BlockSpec((None, F, 1), lambda p: (p, 0, 0)),          # b1
        pl.BlockSpec((None, C, 9 * F), lambda p: (p, 0, 0)),      # w2 packed
        pl.BlockSpec((None, C, 1), lambda p: (p, 0, 0)),          # b2
    ]
    out_specs = (
        pl.BlockSpec((None, C, BN), lambda p: (p, 0, 0)),         # layers
        pl.BlockSpec((None, C, BN), lambda p: (p, 0, 0)),         # symmetric
    )
    out_shape = (jax.ShapeDtypeStruct((PHASE, C, BN), jnp.float32),
                 jax.ShapeDtypeStruct((PHASE, C, BN), jnp.float32))
    scratch_shapes = [
        pltpu.VMEM((C, BN), jnp.float32),       # x resident across phases
        pltpu.VMEM((9 * C, BN), jnp.float32),   # conv1 stacked-tap matrix
        pltpu.VMEM((9 * F, BN), jnp.float32),   # conv2 stacked-tap matrix
    ]

    layers3, sym3 = pl.pallas_call(
        kernel,
        grid=(PHASE,),
        in_specs=in_specs,
        out_specs=out_specs,
        out_shape=out_shape,
        scratch_shapes=scratch_shapes,
        compiler_params=pltpu.CompilerParams(
            dimension_semantics=("arbitrary",)),   # phase axis carries x state
    )(steps, x_flat, y_flat, phi_t, ips_t, masks, w1p, b1, w2p, b2)

    def unflat(a):
        return jnp.transpose(a.reshape(PHASE, C, B, H, W), (0, 2, 1, 3, 4))

    layers = unflat(layers3)
    symmetric = unflat(sym3)
    return ([layers[i] for i in range(PHASE)],
            [symmetric[i] for i in range(PHASE)])


# ----------------------------------------------------------------------------
# Pure-JAX reference (for correctness check)
# ----------------------------------------------------------------------------
def _ref_layer(step, x, y, phi, phisum, w1, b1, w2, b2):
    yb = jnp.sum(phi[None] * x, axis=1)                       # (B,H,W)
    resid = (yb - y) / (phisum + EPS)                         # (B,H,W)
    r = x - step[0] * phi[None] * resid[:, None]              # (B,C,H,W)
    dn = ("NCHW", "OIHW", "NCHW")
    feat = lax.conv_general_dilated(r, w1, (1, 1), "SAME", dimension_numbers=dn)
    feat = jnp.maximum(feat + b1.reshape(1, -1, 1, 1), 0.0)
    delta = lax.conv_general_dilated(feat, w2, (1, 1), "SAME", dimension_numbers=dn)
    delta = delta + b2.reshape(1, -1, 1, 1)
    return r + delta, delta


def end2end_forward_ref(x, y, phi, layer_params):
    phisum = jnp.sum(phi * phi, axis=0, keepdims=True)
    layers, symmetric = [], []
    cur = x
    for (step, w1, b1, w2, b2) in layer_params:
        cur, sym = _ref_layer(step, cur, y, phi, phisum, w1, b1, w2, b2)
        layers.append(cur)
        symmetric.append(sym)
    return layers, symmetric


# ----------------------------------------------------------------------------
# Deterministic parameter init (cfg.share = False, cfg.phase = PHASE)
# ----------------------------------------------------------------------------
def init_params(key, C, F, phase):
    params = []
    for _ in range(phase):
        k1, k2, k3, k4, key = jax.random.split(key, 5)
        step = jnp.full((1,), 0.1, jnp.float32)               # 0.1 * ones(1)
        w1 = 0.05 * jax.random.normal(k1, (F, C, 3, 3), jnp.float32)
        b1 = 0.01 * jax.random.normal(k2, (F, 1), jnp.float32)
        w2 = 0.05 * jax.random.normal(k3, (C, F, 3, 3), jnp.float32)
        b2 = 0.01 * jax.random.normal(k4, (C, 1), jnp.float32)
        params.append((step, w1, b1, w2, b2))
    return params


if __name__ == "__main__":
    B, C, H, W, F, PHASE = 2, 4, 16, 16, 16, 3

    key = jax.random.PRNGKey(0)
    k_phi, k_gt, k_param = jax.random.split(key, 3)

    # Sensing mask (kept away from 0 so the GAP denominator is well conditioned).
    phi = 0.5 + jax.random.uniform(k_phi, (C, H, W), jnp.float32)
    x_gt = jax.random.normal(k_gt, (B, C, H, W), jnp.float32)
    y = jnp.sum(phi[None] * x_gt, axis=1)                     # measurement (B,H,W)
    x0 = phi[None] * y[:, None]                               # Phi^T y init (B,C,H,W)

    layer_params = init_params(k_param, C, F, PHASE)
    packed = pack_params(layer_params)                        # hoisted packing

    layers, symmetric = end2end_forward(x0, y, phi, packed)
    jax.block_until_ready(layers[-1])
    jax.block_until_ready(symmetric[-1])

    layers_ref, symmetric_ref = end2end_forward_ref(x0, y, phi, layer_params)
    for a, b in zip(layers, layers_ref):
        np.testing.assert_allclose(np.asarray(a), np.asarray(b),
                                   rtol=3e-2, atol=3e-2)
    for a, b in zip(symmetric, symmetric_ref):
        np.testing.assert_allclose(np.asarray(a), np.asarray(b),
                                   rtol=3e-2, atol=3e-2)

    print("KERNEL_OK")
</pallas_src>

<mosaic_0001>
module attributes {stable_mosaic.version = 11 : i64} {
  func.func @_e2e_kernel(%arg0: i32, %arg1: memref<3xf32, #tpu.memory_space<smem>>, %arg2: memref<4x512xf32, #tpu.memory_space<vmem>>, %arg3: memref<1x512xf32, #tpu.memory_space<vmem>>, %arg4: memref<4x512xf32, #tpu.memory_space<vmem>>, %arg5: memref<1x512xf32, #tpu.memory_space<vmem>>, %arg6: memref<9x512xf32, #tpu.memory_space<vmem>>, %arg7: memref<1x16x36xbf16, #tpu.memory_space<vmem>>, %arg8: memref<1x16x1xf32, #tpu.memory_space<vmem>>, %arg9: memref<1x4x144xbf16, #tpu.memory_space<vmem>>, %arg10: memref<1x4x1xf32, #tpu.memory_space<vmem>>, %arg11: memref<1x4x512xf32, #tpu.memory_space<vmem>>, %arg12: memref<1x4x512xf32, #tpu.memory_space<vmem>>, %arg13: memref<4x512xf32, #tpu.memory_space<vmem>>, %arg14: memref<36x512xf32, #tpu.memory_space<vmem>>, %arg15: memref<144x512xf32, #tpu.memory_space<vmem>>) attributes {dimension_semantics = [#tpu.dimension_semantics<arbitrary>], iteration_bounds = array<i64: 3>, scalar_prefetch = 0 : i64, scratch_operands = 3 : i64, tpu.core_type = #tpu.core_type<tc>, window_params = [{transform_indices = @transform_0, window_bounds = array<i64: 3>}, {pipeline_mode = #tpu.pipeline_mode<synchronous>, transform_indices = @transform_1, window_bounds = array<i64: 4, 512>}, {pipeline_mode = #tpu.pipeline_mode<synchronous>, transform_indices = @transform_2, window_bounds = array<i64: 1, 512>}, {pipeline_mode = #tpu.pipeline_mode<synchronous>, transform_indices = @transform_3, window_bounds = array<i64: 4, 512>}, {pipeline_mode = #tpu.pipeline_mode<synchronous>, transform_indices = @transform_4, window_bounds = array<i64: 1, 512>}, {pipeline_mode = #tpu.pipeline_mode<synchronous>, transform_indices = @transform_5, window_bounds = array<i64: 9, 512>}, {transform_indices = @transform_6, window_bounds = array<i64: 1, 16, 36>}, {transform_indices = @transform_7, window_bounds = array<i64: 1, 16, 1>}, {transform_indices = @transform_8, window_bounds = array<i64: 1, 4, 144>}, {transform_indices = @transform_9, window_bounds = array<i64: 1, 4, 1>}, {transform_indices = @transform_10, window_bounds = array<i64: 1, 4, 512>}, {transform_indices = @transform_11, window_bounds = array<i64: 1, 4, 512>}]} {
    %c0_i32 = arith.constant 0 : i32
    %0 = arith.cmpi eq, %arg0, %c0_i32 : i32
    %1 = arith.extui %0 : i1 to i32
    %c0_i32_0 = arith.constant 0 : i32
    %2 = arith.cmpi ne, %1, %c0_i32_0 : i32
    scf.if %2 {
      %c0_91 = arith.constant 0 : index
      %c0_92 = arith.constant 0 : index
      %129 = vector.load %arg2[%c0_91, %c0_92] : memref<4x512xf32, #tpu.memory_space<vmem>>, vector<4x512xf32>
      %c0_93 = arith.constant 0 : index
      %c0_94 = arith.constant 0 : index
      %130 = vector.load %arg13[%c0_93, %c0_94] : memref<4x512xf32, #tpu.memory_space<vmem>>, vector<4x512xf32>
      tpu.vector_store %arg13[%c0_93, %c0_94], %129 {strides = array<i32>} : memref<4x512xf32, #tpu.memory_space<vmem>>, vector<4x512xf32>,
    } else {
    }
    %3 = arith.index_cast %arg0 : i32 to index
    %4 = memref.load %arg1[%3] : memref<3xf32, #tpu.memory_space<smem>>
    %c0 = arith.constant 0 : index
    %c0_1 = arith.constant 0 : index
    %5 = vector.load %arg13[%c0, %c0_1] : memref<4x512xf32, #tpu.memory_space<vmem>>, vector<4x512xf32>
    %c0_2 = arith.constant 0 : index
    %c0_3 = arith.constant 0 : index
    %6 = vector.load %arg4[%c0_2, %c0_3] : memref<4x512xf32, #tpu.memory_space<vmem>>, vector<4x512xf32>
    %7 = arith.mulf %6, %5 : vector<4x512xf32>
    %cst = arith.constant dense<0.000000e+00> : vector<512xf32>
    %8 = vector.multi_reduction <add>, %7, %cst [0] : vector<4x512xf32> to vector<512xf32>
    %9 = vector.shape_cast %8 : vector<512xf32> to vector<1x512xf32>
    %c0_4 = arith.constant 0 : index
    %c0_5 = arith.constant 0 : index
    %10 = vector.load %arg3[%c0_4, %c0_5] : memref<1x512xf32, #tpu.memory_space<vmem>>, vector<1x512xf32>
    %11 = arith.subf %9, %10 : vector<1x512xf32>
    %c0_6 = arith.constant 0 : index
    %c0_7 = arith.constant 0 : index
    %12 = vector.load %arg5[%c0_6, %c0_7] : memref<1x512xf32, #tpu.memory_space<vmem>>, vector<1x512xf32>
    %13 = arith.mulf %11, %12 : vector<1x512xf32>
    %14 = vector.broadcast %13 : vector<1x512xf32> to vector<4x512xf32>
    %15 = arith.mulf %6, %14 : vector<4x512xf32>
    %16 = vector.broadcast %4 : f32 to vector<4x512xf32>
    %17 = arith.mulf %16, %15 : vector<4x512xf32>
    %18 = arith.subf %5, %17 : vector<4x512xf32>
    %c17_i32 = arith.constant 17 : i32
    %19 = tpu.dynamic_rotate %18 by %c17_i32 dim 1 : vector<4x512xf32>, i32 -> vector<4x512xf32>
    %c0_8 = arith.constant 0 : index
    %c0_9 = arith.constant 0 : index
    %20 = vector.load %arg6[%c0_8, %c0_9] : memref<9x512xf32, #tpu.memory_space<vmem>>, vector<1x512xf32>
    %21 = vector.broadcast %20 : vector<1x512xf32> to vector<4x512xf32>
    %22 = arith.mulf %19, %21 : vector<4x512xf32>
    %c0_10 = arith.constant 0 : index
    %c0_11 = arith.constant 0 : index
    %23 = vector.load %arg14[%c0_10, %c0_11] : memref<36x512xf32, #tpu.memory_space<vmem>>, vector<4x512xf32>
    tpu.vector_store %arg14[%c0_10, %c0_11], %22 {strides = array<i32>} : memref<36x512xf32, #tpu.memory_space<vmem>>, vector<4x512xf32>,
    %c16_i32 = arith.constant 16 : i32
    %24 = tpu.dynamic_rotate %18 by %c16_i32 dim 1 : vector<4x512xf32>, i32 -> vector<4x512xf32>
    %c1 = arith.constant 1 : index
    %c0_12 = arith.constant 0 : index
    %25 = vector.load %arg6[%c1, %c0_12] : memref<9x512xf32, #tpu.memory_space<vmem>>, vector<1x512xf32>
    %26 = vector.broadcast %25 : vector<1x512xf32> to vector<4x512xf32>
    %27 = arith.mulf %24, %26 : vector<4x512xf32>
    %c4 = arith.constant 4 : index
    %c0_13 = arith.constant 0 : index
    %28 = vector.load %arg14[%c4, %c0_13] : memref<36x512xf32, #tpu.memory_space<vmem>>, vector<4x512xf32>
    tpu.vector_store %arg14[%c4, %c0_13], %27 {strides = array<i32>} : memref<36x512xf32, #tpu.memory_space<vmem>>, vector<4x512xf32>,
    %c15_i32 = arith.constant 15 : i32
    %29 = tpu.dynamic_rotate %18 by %c15_i32 dim 1 : vector<4x512xf32>, i32 -> vector<4x512xf32>
    %c2 = arith.constant 2 : index
    %c0_14 = arith.constant 0 : index
    %30 = vector.load %arg6[%c2, %c0_14] : memref<9x512xf32, #tpu.memory_space<vmem>>, vector<1x512xf32>
    %31 = vector.broadcast %30 : vector<1x512xf32> to vector<4x512xf32>
    %32 = arith.mulf %29, %31 : vector<4x512xf32>
    %c8 = arith.constant 8 : index
    %c0_15 = arith.constant 0 : index
    %33 = vector.load %arg14[%c8, %c0_15] : memref<36x512xf32, #tpu.memory_space<vmem>>, vector<4x512xf32>
    tpu.vector_store %arg14[%c8, %c0_15], %32 {strides = array<i32>} : memref<36x512xf32, #tpu.memory_space<vmem>>, vector<4x512xf32>,
    %c1_i32 = arith.constant 1 : i32
    %34 = tpu.dynamic_rotate %18 by %c1_i32 dim 1 : vector<4x512xf32>, i32 -> vector<4x512xf32>
    %c3 = arith.constant 3 : index
    %c0_16 = arith.constant 0 : index
    %35 = vector.load %arg6[%c3, %c0_16] : memref<9x512xf32, #tpu.memory_space<vmem>>, vector<1x512xf32>
    %36 = vector.broadcast %35 : vector<1x512xf32> to vector<4x512xf32>
    %37 = arith.mulf %34, %36 : vector<4x512xf32>
    %c12 = arith.constant 12 : index
    %c0_17 = arith.constant 0 : index
    %38 = vector.load %arg14[%c12, %c0_17] : memref<36x512xf32, #tpu.memory_space<vmem>>, vector<4x512xf32>
    tpu.vector_store %arg14[%c12, %c0_17], %37 {strides = array<i32>} : memref<36x512xf32, #tpu.memory_space<vmem>>, vector<4x512xf32>,
    %c16 = arith.constant 16 : index
    %c0_18 = arith.constant 0 : index
    %39 = vector.load %arg14[%c16, %c0_18] : memref<36x512xf32, #tpu.memory_space<vmem>>, vector<4x512xf32>
    tpu.vector_store %arg14[%c16, %c0_18], %18 {strides = array<i32>} : memref<36x512xf32, #tpu.memory_space<vmem>>, vector<4x512xf32>,
    %c511_i32 = arith.constant 511 : i32
    %40 = tpu.dynamic_rotate %18 by %c511_i32 dim 1 : vector<4x512xf32>, i32 -> vector<4x512xf32>
    %c5 = arith.constant 5 : index
    %c0_19 = arith.constant 0 : index
    %41 = vector.load %arg6[%c5, %c0_19] : memref<9x512xf32, #tpu.memory_space<vmem>>, vector<1x512xf32>
    %42 = vector.broadcast %41 : vector<1x512xf32> to vector<4x512xf32>
    %43 = arith.mulf %40, %42 : vector<4x512xf32>
    %c20 = arith.constant 20 : index
    %c0_20 = arith.constant 0 : index
    %44 = vector.load %arg14[%c20, %c0_20] : memref<36x512xf32, #tpu.memory_space<vmem>>, vector<4x512xf32>
    tpu.vector_store %arg14[%c20, %c0_20], %43 {strides = array<i32>} : memref<36x512xf32, #tpu.memory_space<vmem>>, vector<4x512xf32>,
    %c497_i32 = arith.constant 497 : i32
    %45 = tpu.dynamic_rotate %18 by %c497_i32 dim 1 : vector<4x512xf32>, i32 -> vector<4x512xf32>
    %c6 = arith.constant 6 : index
    %c0_21 = arith.constant 0 : index
    %46 = vector.load %arg6[%c6, %c0_21] : memref<9x512xf32, #tpu.memory_space<vmem>>, vector<1x512xf32>
    %47 = vector.broadcast %46 : vector<1x512xf32> to vector<4x512xf32>
    %48 = arith.mulf %45, %47 : vector<4x512xf32>
    %c24 = arith.constant 24 : index
    %c0_22 = arith.constant 0 : index
    %49 = vector.load %arg14[%c24, %c0_22] : memref<36x512xf32, #tpu.memory_space<vmem>>, vector<4x512xf32>
    tpu.vector_store %arg14[%c24, %c0_22], %48 {strides = array<i32>} : memref<36x512xf32, #tpu.memory_space<vmem>>, vector<4x512xf32>,
    %c496_i32 = arith.constant 496 : i32
    %50 = tpu.dynamic_rotate %18 by %c496_i32 dim 1 : vector<4x512xf32>, i32 -> vector<4x512xf32>
    %c7 = arith.constant 7 : index
    %c0_23 = arith.constant 0 : index
    %51 = vector.load %arg6[%c7, %c0_23] : memref<9x512xf32, #tpu.memory_space<vmem>>, vector<1x512xf32>
    %52 = vector.broadcast %51 : vector<1x512xf32> to vector<4x512xf32>
    %53 = arith.mulf %50, %52 : vector<4x512xf32>
    %c28 = arith.constant 28 : index
    %c0_24 = arith.constant 0 : index
    %54 = vector.load %arg14[%c28, %c0_24] : memref<36x512xf32, #tpu.memory_space<vmem>>, vector<4x512xf32>
    tpu.vector_store %arg14[%c28, %c0_24], %53 {strides = array<i32>} : memref<36x512xf32, #tpu.memory_space<vmem>>, vector<4x512xf32>,
    %c495_i32 = arith.constant 495 : i32
    %55 = tpu.dynamic_rotate %18 by %c495_i32 dim 1 : vector<4x512xf32>, i32 -> vector<4x512xf32>
    %c8_25 = arith.constant 8 : index
    %c0_26 = arith.constant 0 : index
    %56 = vector.load %arg6[%c8_25, %c0_26] : memref<9x512xf32, #tpu.memory_space<vmem>>, vector<1x512xf32>
    %57 = vector.broadcast %56 : vector<1x512xf32> to vector<4x512xf32>
    %58 = arith.mulf %55, %57 : vector<4x512xf32>
    %c32 = arith.constant 32 : index
    %c0_27 = arith.constant 0 : index
    %59 = vector.load %arg14[%c32, %c0_27] : memref<36x512xf32, #tpu.memory_space<vmem>>, vector<4x512xf32>
    tpu.vector_store %arg14[%c32, %c0_27], %58 {strides = array<i32>} : memref<36x512xf32, #tpu.memory_space<vmem>>, vector<4x512xf32>,
    %c0_28 = arith.constant 0 : index
    %c0_29 = arith.constant 0 : index
    %c0_30 = arith.constant 0 : index
    %60 = vector.load %arg7[%c0_28, %c0_29, %c0_30] : memref<1x16x36xbf16, #tpu.memory_space<vmem>>, vector<1x16x36xbf16>
    %61 = vector.shape_cast %60 : vector<1x16x36xbf16> to vector<16x36xbf16>
    %c0_31 = arith.constant 0 : index
    %c0_32 = arith.constant 0 : index
    %62 = vector.load %arg14[%c0_31, %c0_32] : memref<36x512xf32, #tpu.memory_space<vmem>>, vector<36x512xf32>
    %63 = arith.truncf %62 : vector<36x512xf32> to vector<36x512xbf16>
    %cst_33 = arith.constant dense<0.000000e+00> : vector<16x512xf32>
    %64 = tpu.matmul %61, %63, %cst_33 {dimension_numbers = #tpu.dot_dimension_numbers<[1], [0], [0], [1], [0, 0, 1, 1], [], []>} : vector<16x36xbf16>, vector<36x512xbf16>, vector<16x512xf32> -> vector<16x512xf32>
    %c0_34 = arith.constant 0 : index
    %c0_35 = arith.constant 0 : index
    %c0_36 = arith.constant 0 : index
    %65 = vector.load %arg8[%c0_34, %c0_35, %c0_36] : memref<1x16x1xf32, #tpu.memory_space<vmem>>, vector<1x16x1xf32>
    %66 = vector.shape_cast %65 : vector<1x16x1xf32> to vector<16x1xf32>
    %67 = vector.broadcast %66 : vector<16x1xf32> to vector<16x512xf32>
    %68 = arith.addf %64, %67 : vector<16x512xf32>
    %cst_37 = arith.constant 0.000000e+00 : f32
    %69 = vector.broadcast %cst_37 : f32 to vector<16x512xf32>
    %70 = arith.maximumf %68, %69 : vector<16x512xf32>
    %c17_i32_38 = arith.constant 17 : i32
    %71 = tpu.dynamic_rotate %70 by %c17_i32_38 dim 1 : vector<16x512xf32>, i32 -> vector<16x512xf32>
    %c0_39 = arith.constant 0 : index
    %c0_40 = arith.constant 0 : index
    %72 = vector.load %arg6[%c0_39, %c0_40] : memref<9x512xf32, #tpu.memory_space<vmem>>, vector<1x512xf32>
    %73 = vector.broadcast %72 : vector<1x512xf32> to vector<16x512xf32>
    %74 = arith.mulf %71, %73 : vector<16x512xf32>
    %c0_41 = arith.constant 0 : index
    %c0_42 = arith.constant 0 : index
    %75 = vector.load %arg15[%c0_41, %c0_42] : memref<144x512xf32, #tpu.memory_space<vmem>>, vector<16x512xf32>
    tpu.vector_store %arg15[%c0_41, %c0_42], %74 {strides = array<i32>} : memref<144x512xf32, #tpu.memory_space<vmem>>, vector<16x512xf32>,
    %c16_i32_43 = arith.constant 16 : i32
    %76 = tpu.dynamic_rotate %70 by %c16_i32_43 dim 1 : vector<16x512xf32>, i32 -> vector<16x512xf32>
    %c1_44 = arith.constant 1 : index
    %c0_45 = arith.constant 0 : index
    %77 = vector.load %arg6[%c1_44, %c0_45] : memref<9x512xf32, #tpu.memory_space<vmem>>, vector<1x512xf32>
    %78 = vector.broadcast %77 : vector<1x512xf32> to vector<16x512xf32>
    %79 = arith.mulf %76, %78 : vector<16x512xf32>
    %c16_46 = arith.constant 16 : index
    %c0_47 = arith.constant 0 : index
    %80 = vector.load %arg15[%c16_46, %c0_47] : memref<144x512xf32, #tpu.memory_space<vmem>>, vector<16x512xf32>
    tpu.vector_store %arg15[%c16_46, %c0_47], %79 {strides = array<i32>} : memref<144x512xf32, #tpu.memory_space<vmem>>, vector<16x512xf32>,
    %c15_i32_48 = arith.constant 15 : i32
    %81 = tpu.dynamic_rotate %70 by %c15_i32_48 dim 1 : vector<16x512xf32>, i32 -> vector<16x512xf32>
    %c2_49 = arith.constant 2 : index
    %c0_50 = arith.constant 0 : index
    %82 = vector.load %arg6[%c2_49, %c0_50] : memref<9x512xf32, #tpu.memory_space<vmem>>, vector<1x512xf32>
    %83 = vector.broadcast %82 : vector<1x512xf32> to vector<16x512xf32>
    %84 = arith.mulf %81, %83 : vector<16x512xf32>
    %c32_51 = arith.constant 32 : index
    %c0_52 = arith.constant 0 : index
    %85 = vector.load %arg15[%c32_51, %c0_52] : memref<144x512xf32, #tpu.memory_space<vmem>>, vector<16x512xf32>
    tpu.vector_store %arg15[%c32_51, %c0_52], %84 {strides = array<i32>} : memref<144x512xf32, #tpu.memory_space<vmem>>, vector<16x512xf32>,
    %c1_i32_53 = arith.constant 1 : i32
    %86 = tpu.dynamic_rotate %70 by %c1_i32_53 dim 1 : vector<16x512xf32>, i32 -> vector<16x512xf32>
    %c3_54 = arith.constant 3 : index
    %c0_55 = arith.constant 0 : index
    %87 = vector.load %arg6[%c3_54, %c0_55] : memref<9x512xf32, #tpu.memory_space<vmem>>, vector<1x512xf32>
    %88 = vector.broadcast %87 : vector<1x512xf32> to vector<16x512xf32>
    %89 = arith.mulf %86, %88 : vector<16x512xf32>
    %c48 = arith.constant 48 : index
    %c0_56 = arith.constant 0 : index
    %90 = vector.load %arg15[%c48, %c0_56] : memref<144x512xf32, #tpu.memory_space<vmem>>, vector<16x512xf32>
    tpu.vector_store %arg15[%c48, %c0_56], %89 {strides = array<i32>} : memref<144x512xf32, #tpu.memory_space<vmem>>, vector<16x512xf32>,
    %c64 = arith.constant 64 : index
    %c0_57 = arith.constant 0 : index
    %91 = vector.load %arg15[%c64, %c0_57] : memref<144x512xf32, #tpu.memory_space<vmem>>, vector<16x512xf32>
    tpu.vector_store %arg15[%c64, %c0_57], %70 {strides = array<i32>} : memref<144x512xf32, #tpu.memory_space<vmem>>, vector<16x512xf32>,
    %c511_i32_58 = arith.constant 511 : i32
    %92 = tpu.dynamic_rotate %70 by %c511_i32_58 dim 1 : vector<16x512xf32>, i32 -> vector<16x512xf32>
    %c5_59 = arith.constant 5 : index
    %c0_60 = arith.constant 0 : index
    %93 = vector.load %arg6[%c5_59, %c0_60] : memref<9x512xf32, #tpu.memory_space<vmem>>, vector<1x512xf32>
    %94 = vector.broadcast %93 : vector<1x512xf32> to vector<16x512xf32>
    %95 = arith.mulf %92, %94 : vector<16x512xf32>
    %c80 = arith.constant 80 : index
    %c0_61 = arith.constant 0 : index
    %96 = vector.load %arg15[%c80, %c0_61] : memref<144x512xf32, #tpu.memory_space<vmem>>, vector<16x512xf32>
    tpu.vector_store %arg15[%c80, %c0_61], %95 {strides = array<i32>} : memref<144x512xf32, #tpu.memory_space<vmem>>, vector<16x512xf32>,
    %c497_i32_62 = arith.constant 497 : i32
    %97 = tpu.dynamic_rotate %70 by %c497_i32_62 dim 1 : vector<16x512xf32>, i32 -> vector<16x512xf32>
    %c6_63 = arith.constant 6 : index
    %c0_64 = arith.constant 0 : index
    %98 = vector.load %arg6[%c6_63, %c0_64] : memref<9x512xf32, #tpu.memory_space<vmem>>, vector<1x512xf32>
    %99 = vector.broadcast %98 : vector<1x512xf32> to vector<16x512xf32>
    %100 = arith.mulf %97, %99 : vector<16x512xf32>
    %c96 = arith.constant 96 : index
    %c0_65 = arith.constant 0 : index
    %101 = vector.load %arg15[%c96, %c0_65] : memref<144x512xf32, #tpu.memory_space<vmem>>, vector<16x512xf32>
    tpu.vector_store %arg15[%c96, %c0_65], %100 {strides = array<i32>} : memref<144x512xf32, #tpu.memory_space<vmem>>, vector<16x512xf32>,
    %c496_i32_66 = arith.constant 496 : i32
    %102 = tpu.dynamic_rotate %70 by %c496_i32_66 dim 1 : vector<16x512xf32>, i32 -> vector<16x512xf32>
    %c7_67 = arith.constant 7 : index
    %c0_68 = arith.constant 0 : index
    %103 = vector.load %arg6[%c7_67, %c0_68] : memref<9x512xf32, #tpu.memory_space<vmem>>, vector<1x512xf32>
    %104 = vector.broadcast %103 : vector<1x512xf32> to vector<16x512xf32>
    %105 = arith.mulf %102, %104 : vector<16x512xf32>
    %c112 = arith.constant 112 : index
    %c0_69 = arith.constant 0 : index
    %106 = vector.load %arg15[%c112, %c0_69] : memref<144x512xf32, #tpu.memory_space<vmem>>, vector<16x512xf32>
    tpu.vector_store %arg15[%c112, %c0_69], %105 {strides = array<i32>} : memref<144x512xf32, #tpu.memory_space<vmem>>, vector<16x512xf32>,
    %c495_i32_70 = arith.constant 495 : i32
    %107 = tpu.dynamic_rotate %70 by %c495_i32_70 dim 1 : vector<16x512xf32>, i32 -> vector<16x512xf32>
    %c8_71 = arith.constant 8 : index
    %c0_72 = arith.constant 0 : index
    %108 = vector.load %arg6[%c8_71, %c0_72] : memref<9x512xf32, #tpu.memory_space<vmem>>, vector<1x512xf32>
    %109 = vector.broadcast %108 : vector<1x512xf32> to vector<16x512xf32>
    %110 = arith.mulf %107, %109 : vector<16x512xf32>
    %c128 = arith.constant 128 : index
    %c0_73 = arith.constant 0 : index
    %111 = vector.load %arg15[%c128, %c0_73] : memref<144x512xf32, #tpu.memory_space<vmem>>, vector<16x512xf32>
    tpu.vector_store %arg15[%c128, %c0_73], %110 {strides = array<i32>} : memref<144x512xf32, #tpu.memory_space<vmem>>, vector<16x512xf32>,
    %c0_74 = arith.constant 0 : index
    %c0_75 = arith.constant 0 : index
    %c0_76 = arith.constant 0 : index
    %112 = vector.load %arg9[%c0_74, %c0_75, %c0_76] : memref<1x4x144xbf16, #tpu.memory_space<vmem>>, vector<1x4x144xbf16>
    %113 = vector.shape_cast %112 : vector<1x4x144xbf16> to vector<4x144xbf16>
    %c0_77 = arith.constant 0 : index
    %c0_78 = arith.constant 0 : index
    %114 = vector.load %arg15[%c0_77, %c0_78] : memref<144x512xf32, #tpu.memory_space<vmem>>, vector<144x512xf32>
    %115 = arith.truncf %114 : vector<144x512xf32> to vector<144x512xbf16>
    %cst_79 = arith.constant dense<0.000000e+00> : vector<4x512xf32>
    %116 = tpu.matmul %113, %115, %cst_79 {dimension_numbers = #tpu.dot_dimension_numbers<[1], [0], [0], [1], [0, 0, 1, 1], [], []>} : vector<4x144xbf16>, vector<144x512xbf16>, vector<4x512xf32> -> vector<4x512xf32>
    %c0_80 = arith.constant 0 : index
    %c0_81 = arith.constant 0 : index
    %c0_82 = arith.constant 0 : index
    %117 = vector.load %arg10[%c0_80, %c0_81, %c0_82] : memref<1x4x1xf32, #tpu.memory_space<vmem>>, vector<1x4x1xf32>
    %118 = vector.shape_cast %117 : vector<1x4x1xf32> to vector<4x1xf32>
    %119 = vector.broadcast %118 : vector<4x1xf32> to vector<4x512xf32>
    %120 = arith.addf %116, %119 : vector<4x512xf32>
    %121 = arith.addf %18, %120 : vector<4x512xf32>
    %c0_83 = arith.constant 0 : index
    %c0_84 = arith.constant 0 : index
    %122 = vector.load %arg13[%c0_83, %c0_84] : memref<4x512xf32, #tpu.memory_space<vmem>>, vector<4x512xf32>
    tpu.vector_store %arg13[%c0_83, %c0_84], %121 {strides = array<i32>} : memref<4x512xf32, #tpu.memory_space<vmem>>, vector<4x512xf32>,
    %c0_85 = arith.constant 0 : index
    %c0_86 = arith.constant 0 : index
    %c0_87 = arith.constant 0 : index
    %123 = vector.load %arg11[%c0_85, %c0_86, %c0_87] : memref<1x4x512xf32, #tpu.memory_space<vmem>>, vector<1x4x512xf32>
    %124 = vector.shape_cast %123 : vector<1x4x512xf32> to vector<4x512xf32>
    %125 = vector.shape_cast %121 : vector<4x512xf32> to vector<1x4x512xf32>
    tpu.vector_store %arg11[%c0_85, %c0_86, %c0_87], %125 {strides = array<i32>} : memref<1x4x512xf32, #tpu.memory_space<vmem>>, vector<1x4x512xf32>,
    %c0_88 = arith.constant 0 : index
    %c0_89 = arith.constant 0 : index
    %c0_90 = arith.constant 0 : index
    %126 = vector.load %arg12[%c0_88, %c0_89, %c0_90] : memref<1x4x512xf32, #tpu.memory_space<vmem>>, vector<1x4x512xf32>
    %127 = vector.shape_cast %126 : vector<1x4x512xf32> to vector<4x512xf32>
    %128 = vector.shape_cast %120 : vector<4x512xf32> to vector<1x4x512xf32>
    tpu.vector_store %arg12[%c0_88, %c0_89, %c0_90], %128 {strides = array<i32>} : memref<1x4x512xf32, #tpu.memory_space<vmem>>, vector<1x4x512xf32>,
    return
  }
  func.func @transform_0(%arg0: i32) -> i32 {
    %c0_i32 = arith.constant 0 : i32
    %c0_i32_0 = arith.constant 0 : i32
    return %c0_i32 : i32
  }
  func.func @transform_1(%arg0: i32) -> (i32, i32) {
    %c0_i32 = arith.constant 0 : i32
    %c0_i32_0 = arith.constant 0 : i32
    %c0_i32_1 = arith.constant 0 : i32
    return %c0_i32, %c0_i32_0 : i32, i32
  }
  func.func @transform_2(%arg0: i32) -> (i32, i32) {
    %c0_i32 = arith.constant 0 : i32
    %c0_i32_0 = arith.constant 0 : i32
    %c0_i32_1 = arith.constant 0 : i32
    return %c0_i32, %c0_i32_0 : i32, i32
  }
  func.func @transform_3(%arg0: i32) -> (i32, i32) {
    %c0_i32 = arith.constant 0 : i32
    %c0_i32_0 = arith.constant 0 : i32
    %c0_i32_1 = arith.constant 0 : i32
    return %c0_i32, %c0_i32_0 : i32, i32
  }
  func.func @transform_4(%arg0: i32) -> (i32, i32) {
    %c0_i32 = arith.constant 0 : i32
    %c0_i32_0 = arith.constant 0 : i32
    %c0_i32_1 = arith.constant 0 : i32
    return %c0_i32, %c0_i32_0 : i32, i32
  }
  func.func @transform_5(%arg0: i32) -> (i32, i32) {
    %c0_i32 = arith.constant 0 : i32
    %c0_i32_0 = arith.constant 0 : i32
    %c0_i32_1 = arith.constant 0 : i32
    return %c0_i32, %c0_i32_0 : i32, i32
  }
  func.func @transform_6(%arg0: i32) -> (i32, i32, i32) {
    %c0_i32 = arith.constant 0 : i32
    %c0_i32_0 = arith.constant 0 : i32
    %c0_i32_1 = arith.constant 0 : i32
    return %arg0, %c0_i32, %c0_i32_0 : i32, i32, i32
  }
  func.func @transform_7(%arg0: i32) -> (i32, i32, i32) {
    %c0_i32 = arith.constant 0 : i32
    %c0_i32_0 = arith.constant 0 : i32
    %c0_i32_1 = arith.constant 0 : i32
    return %arg0, %c0_i32, %c0_i32_0 : i32, i32, i32
  }
  func.func @transform_8(%arg0: i32) -> (i32, i32, i32) {
    %c0_i32 = arith.constant 0 : i32
    %c0_i32_0 = arith.constant 0 : i32
    %c0_i32_1 = arith.constant 0 : i32
    return %arg0, %c0_i32, %c0_i32_0 : i32, i32, i32
  }
  func.func @transform_9(%arg0: i32) -> (i32, i32, i32) {
    %c0_i32 = arith.constant 0 : i32
    %c0_i32_0 = arith.constant 0 : i32
    %c0_i32_1 = arith.constant 0 : i32
    return %arg0, %c0_i32, %c0_i32_0 : i32, i32, i32
  }
  func.func @transform_10(%arg0: i32) -> (i32, i32, i32) {
    %c0_i32 = arith.constant 0 : i32
    %c0_i32_0 = arith.constant 0 : i32
    %c0_i32_1 = arith.constant 0 : i32
    return %arg0, %c0_i32, %c0_i32_0 : i32, i32, i32
  }
  func.func @transform_11(%arg0: i32) -> (i32, i32, i32) {
    %c0_i32 = arith.constant 0 : i32
    %c0_i32_0 = arith.constant 0 : i32
    %c0_i32_1 = arith.constant 0 : i32
    return %arg0, %c0_i32, %c0_i32_0 : i32, i32, i32
  }
}

</mosaic_0001>

<llo_original>
// kernel: end2end_forward.1
$region0: #{end2end_forward.1}
  #allocation0 [shape = 'u32[]', space=smem, size = 0x4, offset = 0x4, fixed_abs, tag = 'smem constant byte address 0x4 - core index']
  #allocation1 [shape = 'u32[144,128]{1,0:T(1,128)}', space=vmem, size = 0x12000, scoped, tag = 'internal scratch']
  #allocation2 [shape = 'f32[4,512]{1,0:T(4,128)}', space=vmem, size = 0x2000, scoped, tag = 'scratch operand']
  #allocation3 [shape = 'f32[36,512]{1,0:T(8,128)}', space=vmem, size = 0x14000, scoped, tag = 'scratch operand']
  #allocation4 [shape = 'f32[144,512]{1,0:T(8,128)}', space=vmem, size = 0x48000, scoped, tag = 'scratch operand']
  %s0 = inlined_call_operand.vmem [shape: f32[3], index: 0, kind: input, shape index: {}]
  %s1 = inlined_call_operand.vmem [shape: f32[4,512], index: 1, kind: input, shape index: {}]
  %s2 = inlined_call_operand.vmem [shape: f32[1,512], index: 2, kind: input, shape index: {}]
  %s3 = inlined_call_operand.vmem [shape: f32[4,512], index: 3, kind: input, shape index: {}]
  %s4 = inlined_call_operand.vmem [shape: f32[1,512], index: 4, kind: input, shape index: {}]
  %s5 = inlined_call_operand.vmem [shape: f32[9,512], index: 5, kind: input, shape index: {}]
  %s6 = inlined_call_operand.vmem [shape: bf16[3,16,36], index: 6, kind: input, shape index: {}]
  %s7 = inlined_call_operand.vmem [shape: f32[3,16,1], index: 7, kind: input, shape index: {}]
  %s8 = inlined_call_operand.vmem [shape: bf16[3,4,144], index: 8, kind: input, shape index: {}]
  %s9 = inlined_call_operand.vmem [shape: f32[3,4,1], index: 9, kind: input, shape index: {}]
  %s10 = inlined_call_operand.vmem [shape: f32[3,4,512], index: 10, kind: output, shape index: {0}]
  %s11 = inlined_call_operand.vmem [shape: f32[3,4,512], index: 11, kind: output, shape index: {1}]
  %12 = xla_tuple %s10, %s11
  %s13 = sld [smem:[#allocation0]]
  $region89: #{end2end_forward.1} parent=0
    _
  %s15 = ssub.s32 1, %s13
  %s16 = scalar_select 0, %s15, %s13
  $region1: #{end2end_forward.1} parent=0
    #allocation5 [shape = 'u8[512]{0}', space=smem, size = 0x200, scoped, tag = 'input window, operand 0, single buffered']
    #allocation6 [shape = 's32[2]{0}', space=sflag, size = 0x8, scoped, tag = 'scoped memory for end2end_forward.1']
    %17 = vsyncpa [#allocation6], 0
    loop: start=0, step=1, limit=5
    $region2: #{end2end_forward.1} parent=1 // loop_pre_header
      _
    $region3: #{end2end_forward.1} parent=1 // loop_header
      %s19 = sphi 0, %s23
      %p20 = scmp.ge.s32.totalorder %s19, 5
      %s27 = sphi 0, %s27
      %s29 = sphi 0, %s27
      %s30 = sphi 0, %s29
      %s44 = sphi 0, %s30
      %s48 = sphi 0, %s48
      %s50 = sphi 0, %s48
      %s51 = sphi 0, %s50
      %s65 = sphi 0, %s51
      %s69 = sphi 0, %s69
      %s71 = sphi 0, %s69
      %s72 = sphi 0, %s71
      %s86 = sphi 0, %s72
      %s90 = sphi 0, %s90
      %s92 = sphi 0, %s90
      %s93 = sphi 0, %s92
      %s107 = sphi 0, %s93
      %s111 = sphi 0, %s111
      %s113 = sphi 0, %s111
      %s114 = sphi 0, %s113
      %s128 = sphi 0, %s114
      %s132 = sphi 0, %s132
      %s134 = sphi 0, %s132
      %s135 = sphi 0, %s134
      %s149 = sphi 0, %s135
      %s155 = sphi 0, %s157
      %s158 = sphi 0, %s155
      %s159 = sphi 0, %s158
      %s175 = sphi 0, %s159
      %s181 = sphi 0, %s183
      %s184 = sphi 0, %s181
      %s185 = sphi 0, %s184
      %s201 = sphi 0, %s185
      %s207 = sphi 0, %s209
      %s210 = sphi 0, %s207
      %s211 = sphi 0, %s210
      %s227 = sphi 0, %s211
      %s233 = sphi 0, %s235
      %s236 = sphi 0, %s233
      %s237 = sphi 0, %s236
      %s253 = sphi 0, %s237
      %s259 = sphi 0, %s261
      %s262 = sphi 0, %s259
      %s263 = sphi 0, %s262
      %s279 = sphi 0, %s263
      %s285 = sphi 0, %s287
      %s288 = sphi 0, %s285
      %s289 = sphi 0, %s288
      %s305 = sphi 0, %s289
    $region4: #{end2end_forward.1} parent=1 // loop_header_branch
      %22 = sbr.rel (%p20) target = $region8
    $region5: #{end2end_forward.1} parent=1 // loop_body
      %s24 = ssub.s32 %s19, 1
      %s25 = ssub.s32 %s19, 2
      %s26 = sadd.s32 %s19, 1
      %s28 = sadd.s32 %s27, 1
      %p31 = scmp.eq.s32.totalorder %s19, 2
      %p32 = scmp.ne.s32.totalorder %s27, %s29
      %p33 = scmp.eq.s32.totalorder %s19, 0
      %p34 = por %p32, %p33
      %p35 = scmp.ne.s32.totalorder %s27, %s29
      %p36 = scmp.eq.s32.totalorder %s24, 2
      %p37 = por %p35, %p36
      %p38 = scmp.ne.s32.totalorder %s29, %s30
      %p39 = scmp.eq.s32.totalorder %s24, 0
      %p40 = por %p38, %p39
      %p41 = scmp.ne.s32.totalorder %s29, %s30
      %p42 = scmp.eq.s32.totalorder %s25, 2
      %p43 = por %p41, %p42
      %p45 = scmp.ne.s32.totalorder %s30, %s44
      %p46 = scmp.eq.s32.totalorder %s25, 0
      %p47 = por %p45, %p46
      %s49 = sadd.s32 %s48, 1
      %p52 = scmp.eq.s32.totalorder %s19, 2
      %p53 = scmp.ne.s32.totalorder %s48, %s50
      %p54 = scmp.eq.s32.totalorder %s19, 0
      %p55 = por %p53, %p54
      %p56 = scmp.ne.s32.totalorder %s48, %s50
      %p57 = scmp.eq.s32.totalorder %s24, 2
      %p58 = por %p56, %p57
      %p59 = scmp.ne.s32.totalorder %s50, %s51
      %p60 = scmp.eq.s32.totalorder %s24, 0
      %p61 = por %p59, %p60
      %p62 = scmp.ne.s32.totalorder %s50, %s51
      %p63 = scmp.eq.s32.totalorder %s25, 2
      %p64 = por %p62, %p63
      %p66 = scmp.ne.s32.totalorder %s51, %s65
      %p67 = scmp.eq.s32.totalorder %s25, 0
      %p68 = por %p66, %p67
      %s70 = sadd.s32 %s69, 1
      %p73 = scmp.eq.s32.totalorder %s19, 2
      %p74 = scmp.ne.s32.totalorder %s69, %s71
      %p75 = scmp.eq.s32.totalorder %s19, 0
      %p76 = por %p74, %p75
      %p77 = scmp.ne.s32.totalorder %s69, %s71
      %p78 = scmp.eq.s32.totalorder %s24, 2
      %p79 = por %p77, %p78
      %p80 = scmp.ne.s32.totalorder %s71, %s72
      %p81 = scmp.eq.s32.totalorder %s24, 0
      %p82 = por %p80, %p81
      %p83 = scmp.ne.s32.totalorder %s71, %s72
      %p84 = scmp.eq.s32.totalorder %s25, 2
      %p85 = por %p83, %p84
      %p87 = scmp.ne.s32.totalorder %s72, %s86
      %p88 = scmp.eq.s32.totalorder %s25, 0
      %p89 = por %p87, %p88
      %s91 = sadd.s32 %s90, 1
      %p94 = scmp.eq.s32.totalorder %s19, 2
      %p95 = scmp.ne.s32.totalorder %s90, %s92
      %p96 = scmp.eq.s32.totalorder %s19, 0
      %p97 = por %p95, %p96
      %p98 = scmp.ne.s32.totalorder %s90, %s92
      %p99 = scmp.eq.s32.totalorder %s24, 2
      %p100 = por %p98, %p99
      %p101 = scmp.ne.s32.totalorder %s92, %s93
      %p102 = scmp.eq.s32.totalorder %s24, 0
      %p103 = por %p101, %p102
      %p104 = scmp.ne.s32.totalorder %s92, %s93
      %p105 = scmp.eq.s32.totalorder %s25, 2
      %p106 = por %p104, %p105
      %p108 = scmp.ne.s32.totalorder %s93, %s107
      %p109 = scmp.eq.s32.totalorder %s25, 0
      %p110 = por %p108, %p109
      %s112 = sadd.s32 %s111, 1
      %p115 = scmp.eq.s32.totalorder %s19, 2
      %p116 = scmp.ne.s32.totalorder %s111, %s113
      %p117 = scmp.eq.s32.totalorder %s19, 0
      %p118 = por %p116, %p117
      %p119 = scmp.ne.s32.totalorder %s111, %s113
      %p120 = scmp.eq.s32.totalorder %s24, 2
      %p121 = por %p119, %p120
      %p122 = scmp.ne.s32.totalorder %s113, %s114
      %p123 = scmp.eq.s32.totalorder %s24, 0
      %p124 = por %p122, %p123
      %p125 = scmp.ne.s32.totalorder %s113, %s114
      %p126 = scmp.eq.s32.totalorder %s25, 2
      %p127 = por %p125, %p126
      %p129 = scmp.ne.s32.totalorder %s114, %s128
      %p130 = scmp.eq.s32.totalorder %s25, 0
      %p131 = por %p129, %p130
      %s133 = sadd.s32 %s132, 1
      %p136 = scmp.eq.s32.totalorder %s19, 2
      %p137 = scmp.ne.s32.totalorder %s132, %s134
      %p138 = scmp.eq.s32.totalorder %s19, 0
      %p139 = por %p137, %p138
      %p140 = scmp.ne.s32.totalorder %s132, %s134
      %p141 = scmp.eq.s32.totalorder %s24, 2
      %p142 = por %p140, %p141
      %p143 = scmp.ne.s32.totalorder %s134, %s135
      %p144 = scmp.eq.s32.totalorder %s24, 0
      %p145 = por %p143, %p144
      %p146 = scmp.ne.s32.totalorder %s134, %s135
      %p147 = scmp.eq.s32.totalorder %s25, 2
      %p148 = por %p146, %p147
      %p150 = scmp.ne.s32.totalorder %s135, %s149
      %p151 = scmp.eq.s32.totalorder %s25, 0
      %p152 = por %p150, %p151
      %s153 = ssub.s32 %s19, %s26
      %p154 = scmp.eq.s32.totalorder %s153, 0
      %s156 = sadd.s32 %s155, 1
      %s157 = scalar_select %p154, %s155, %s156
      %p160 = pneg %p154
      %p161 = scmp.eq.s32.totalorder %s19, 2
      %p162 = por %p160, %p161
      %p163 = scmp.ne.s32.totalorder %s155, %s158
      %p164 = scmp.eq.s32.totalorder %s19, 0
      %p165 = por %p163, %p164
      %p166 = scmp.ne.s32.totalorder %s155, %s158
      %p167 = scmp.eq.s32.totalorder %s24, 2
      %p168 = por %p166, %p167
      %p169 = scmp.ne.s32.totalorder %s158, %s159
      %p170 = scmp.eq.s32.totalorder %s24, 0
      %p171 = por %p169, %p170
      %p172 = scmp.ne.s32.totalorder %s158, %s159
      %p173 = scmp.eq.s32.totalorder %s25, 2
      %p174 = por %p172, %p173
      %p176 = scmp.ne.s32.totalorder %s159, %s175
      %p177 = scmp.eq.s32.totalorder %s25, 0
      %p178 = por %p176, %p177
      %s179 = ssub.s32 %s19, %s26
      %p180 = scmp.eq.s32.totalorder %s179, 0
      %s182 = sadd.s32 %s181, 1
      %s183 = scalar_select %p180, %s181, %s182
      %p186 = pneg %p180
      %p187 = scmp.eq.s32.totalorder %s19, 2
      %p188 = por %p186, %p187
      %p189 = scmp.ne.s32.totalorder %s181, %s184
      %p190 = scmp.eq.s32.totalorder %s19, 0
      %p191 = por %p189, %p190
      %p192 = scmp.ne.s32.totalorder %s181, %s184
      %p193 = scmp.eq.s32.totalorder %s24, 2
      %p194 = por %p192, %p193
      %p195 = scmp.ne.s32.totalorder %s184, %s185
      %p196 = scmp.eq.s32.totalorder %s24, 0
      %p197 = por %p195, %p196
      %p198 = scmp.ne.s32.totalorder %s184, %s185
      %p199 = scmp.eq.s32.totalorder %s25, 2
      %p200 = por %p198, %p199
      %p202 = scmp.ne.s32.totalorder %s185, %s201
      %p203 = scmp.eq.s32.totalorder %s25, 0
      %p204 = por %p202, %p203
      %s205 = ssub.s32 %s19, %s26
      %p206 = scmp.eq.s32.totalorder %s205, 0
      %s208 = sadd.s32 %s207, 1
      %s209 = scalar_select %p206, %s207, %s208
      %p212 = pneg %p206
      %p213 = scmp.eq.s32.totalorder %s19, 2
      %p214 = por %p212, %p213
      %p215 = scmp.ne.s32.totalorder %s207, %s210
      %p216 = scmp.eq.s32.totalorder %s19, 0
      %p217 = por %p215, %p216
      %p218 = scmp.ne.s32.totalorder %s207, %s210
      %p219 = scmp.eq.s32.totalorder %s24, 2
      %p220 = por %p218, %p219
      %p221 = scmp.ne.s32.totalorder %s210, %s211
      %p222 = scmp.eq.s32.totalorder %s24, 0
      %p223 = por %p221, %p222
      %p224 = scmp.ne.s32.totalorder %s210, %s211
      %p225 = scmp.eq.s32.totalorder %s25, 2
      %p226 = por %p224, %p225
      %p228 = scmp.ne.s32.totalorder %s211, %s227
      %p229 = scmp.eq.s32.totalorder %s25, 0
      %p230 = por %p228, %p229
      %s231 = ssub.s32 %s19, %s26
      %p232 = scmp.eq.s32.totalorder %s231, 0
      %s234 = sadd.s32 %s233, 1
      %s235 = scalar_select %p232, %s233, %s234
      %p238 = pneg %p232
      %p239 = scmp.eq.s32.totalorder %s19, 2
      %p240 = por %p238, %p239
      %p241 = scmp.ne.s32.totalorder %s233, %s236
      %p242 = scmp.eq.s32.totalorder %s19, 0
      %p243 = por %p241, %p242
      %p244 = scmp.ne.s32.totalorder %s233, %s236
      %p245 = scmp.eq.s32.totalorder %s24, 2
      %p246 = por %p244, %p245
      %p247 = scmp.ne.s32.totalorder %s236, %s237
      %p248 = scmp.eq.s32.totalorder %s24, 0
      %p249 = por %p247, %p248
      %p250 = scmp.ne.s32.totalorder %s236, %s237
      %p251 = scmp.eq.s32.totalorder %s25, 2
      %p252 = por %p250, %p251
      %p254 = scmp.ne.s32.totalorder %s237, %s253
      %p255 = scmp.eq.s32.totalorder %s25, 0
      %p256 = por %p254, %p255
      %s257 = ssub.s32 %s19, %s26
      %p258 = scmp.eq.s32.totalorder %s257, 0
      %s260 = sadd.s32 %s259, 1
      %s261 = scalar_select %p258, %s259, %s260
      %p264 = pneg %p258
      %p265 = scmp.eq.s32.totalorder %s19, 2
      %p266 = por %p264, %p265
      %p267 = scmp.ne.s32.totalorder %s259, %s262
      %p268 = scmp.eq.s32.totalorder %s19, 0
      %p269 = por %p267, %p268
      %p270 = scmp.ne.s32.totalorder %s259, %s262
      %p271 = scmp.eq.s32.totalorder %s24, 2
      %p272 = por %p270, %p271
      %p273 = scmp.ne.s32.totalorder %s262, %s263
      %p274 = scmp.eq.s32.totalorder %s24, 0
      %p275 = por %p273, %p274
      %p276 = scmp.ne.s32.totalorder %s262, %s263
      %p277 = scmp.eq.s32.totalorder %s25, 2
      %p278 = por %p276, %p277
      %p280 = scmp.ne.s32.totalorder %s263, %s279
      %p281 = scmp.eq.s32.totalorder %s25, 0
      %p282 = por %p280, %p281
      %s283 = ssub.s32 %s19, %s26
      %p284 = scmp.eq.s32.totalorder %s283, 0
      %s286 = sadd.s32 %s285, 1
      %s287 = scalar_select %p284, %s285, %s286
      %p290 = pneg %p284
      %p291 = scmp.eq.s32.totalorder %s19, 2
      %p292 = por %p290, %p291
      %p293 = scmp.ne.s32.totalorder %s285, %s288
      %p294 = scmp.eq.s32.totalorder %s19, 0
      %p295 = por %p293, %p294
      %p296 = scmp.ne.s32.totalorder %s285, %s288
      %p297 = scmp.eq.s32.totalorder %s24, 2
      %p298 = por %p296, %p297
      %p299 = scmp.ne.s32.totalorder %s288, %s289
      %p300 = scmp.eq.s32.totalorder %s24, 0
      %p301 = por %p299, %p300
      %p302 = scmp.ne.s32.totalorder %s288, %s289
      %p303 = scmp.eq.s32.totalorder %s25, 2
      %p304 = por %p302, %p303
      %p306 = scmp.ne.s32.totalorder %s289, %s305
      %p307 = scmp.eq.s32.totalorder %s25, 0
      %p308 = por %p306, %p307
      %p309 = scmp.le.s32.totalorder 1, %s19
      %p310 = scmp.lt.s32.totalorder %s19, 4
      %p311 = pnand %p309, %p310
      %p312 = pneg %p311
      // Predicated region
      $region9: #{end2end_forward.1} parent=5 // pred_check
        _
      $region10: #{end2end_forward.1} parent=5 // pred_check_branch
        %314 = sbr.rel (%p311) target = $region12
      $region11: #{end2end_forward.1} parent=5 // pred_region
        %s315 = ssub.s32 %s19, 1
        // Predicated region
        $region13: #{end2end_forward.1} parent=11 // pred_check
          %p316 = pneg %p40
        $region14: #{end2end_forward.1} parent=11 // pred_check_branch
          %318 = sbr.rel (%p316) target = $region16
        $region15: #{end2end_forward.1} parent=11 // pred_region
          %s320 = ssub.s32 16, 16
          %321 = vsyncadd [#allocation6], %s320
          %s323 = sshll.u32 %s0, 4
          %s324 = int_to_ptr.vmem [resolvable:$true] %s323
          %326 = dma.vmem_to_smem %s324, 16, [#allocation5], [#allocation6]
        $region16: #{end2end_forward.1} parent=11 // pred_fallthru
          _
        // Predicated region
        $region17: #{end2end_forward.1} parent=11 // pred_check
          %p327 = pneg %p61
        $region18: #{end2end_forward.1} parent=11 // pred_check_branch
          %329 = sbr.rel (%p327) target = $region20
        $region19: #{end2end_forward.1} parent=11 // pred_region
          _
        $region20: #{end2end_forward.1} parent=11 // pred_fallthru
          _
        // Predicated region
        $region21: #{end2end_forward.1} parent=11 // pred_check
          %p330 = pneg %p82
        $region22: #{end2end_forward.1} parent=11 // pred_check_branch
          %332 = sbr.rel (%p330) target = $region24
        $region23: #{end2end_forward.1} parent=11 // pred_region
          _
        $region24: #{end2end_forward.1} parent=11 // pred_fallthru
          _
        // Predicated region
        $region25: #{end2end_forward.1} parent=11 // pred_check
          %p333 = pneg %p103
        $region26: #{end2end_forward.1} parent=11 // pred_check_branch
          %335 = sbr.rel (%p333) target = $region28
        $region27: #{end2end_forward.1} parent=11 // pred_region
          _
        $region28: #{end2end_forward.1} parent=11 // pred_fallthru
          _
        // Predicated region
        $region29: #{end2end_forward.1} parent=11 // pred_check
          %p336 = pneg %p124
        $region30: #{end2end_forward.1} parent=11 // pred_check_branch
          %338 = sbr.rel (%p336) target = $region32
        $region31: #{end2end_forward.1} parent=11 // pred_region
          _
        $region32: #{end2end_forward.1} parent=11 // pred_fallthru
          _
        // Predicated region
        $region33: #{end2end_forward.1} parent=11 // pred_check
          %p339 = pneg %p145
        $region34: #{end2end_forward.1} parent=11 // pred_check_branch
          %341 = sbr.rel (%p339) target = $region36
        $region35: #{end2end_forward.1} parent=11 // pred_region
          _
        $region36: #{end2end_forward.1} parent=11 // pred_fallthru
          _
      $region12: #{end2end_forward.1} parent=5 // pred_fallthru
        _
      %p342 = scmp.lt.s32.totalorder %s19, 3
      // Predicated region
      $region37: #{end2end_forward.1} parent=5 // pred_check
        %p343 = pneg %p342
      $region38: #{end2end_forward.1} parent=5 // pred_check_branch
        %345 = sbr.rel (%p343) target = $region40
      $region39: #{end2end_forward.1} parent=5 // pred_region
        // Predicated region
        $region41: #{end2end_forward.1} parent=39 // pred_check
          %p346 = pneg %p165
        $region42: #{end2end_forward.1} parent=39 // pred_check_branch
          %348 = sbr.rel (%p346) target = $region44
        $region43: #{end2end_forward.1} parent=39 // pred_region
          %p349 = scmp.lt.s32.totalorder %s19, 2
          %s350 = scalar_select %p349, %s19, 2
          %s351 = smul.addr %s350, 2
          %s352 = smul.addr %s351, 4
          %s353 = scalar_lea.vmem %s6, %s352
        $region44: #{end2end_forward.1} parent=39 // pred_fallthru
          _
        // Predicated region
        $region45: #{end2end_forward.1} parent=39 // pred_check
          %p354 = pneg %p191
        $region46: #{end2end_forward.1} parent=39 // pred_check_branch
          %356 = sbr.rel (%p354) target = $region48
        $region47: #{end2end_forward.1} parent=39 // pred_region
          %p357 = scmp.lt.s32.totalorder %s19, 2
          %s358 = scalar_select %p357, %s19, 2
          %s359 = smul.addr %s358, 2
          %s360 = smul.addr %s359, 8
          %s361 = scalar_lea.vmem %s7, %s360
        $region48: #{end2end_forward.1} parent=39 // pred_fallthru
          _
        // Predicated region
        $region49: #{end2end_forward.1} parent=39 // pred_check
          %p362 = pneg %p217
        $region50: #{end2end_forward.1} parent=39 // pred_check_branch
          %364 = sbr.rel (%p362) target = $region52
        $region51: #{end2end_forward.1} parent=39 // pred_region
          %p365 = scmp.lt.s32.totalorder %s19, 2
          %s366 = scalar_select %p365, %s19, 2
          %s367 = smul.addr %s366, 2
          %s368 = smul.addr %s367, 2
          %s369 = scalar_lea.vmem %s8, %s368
        $region52: #{end2end_forward.1} parent=39 // pred_fallthru
          _
        // Predicated region
        $region53: #{end2end_forward.1} parent=39 // pred_check
          %p370 = pneg %p243
        $region54: #{end2end_forward.1} parent=39 // pred_check_branch
          %372 = sbr.rel (%p370) target = $region56
        $region55: #{end2end_forward.1} parent=39 // pred_region
          %p373 = scmp.lt.s32.totalorder %s19, 2
          %s374 = scalar_select %p373, %s19, 2
          %s375 = smul.addr %s374, 4
          %s376 = scalar_lea.vmem %s9, %s375
        $region56: #{end2end_forward.1} parent=39 // pred_fallthru
          _
      $region40: #{end2end_forward.1} parent=5 // pred_fallthru
        _
      %p377 = scmp.le.s32.totalorder 1, %s19
      %p378 = scmp.lt.s32.totalorder %s19, 4
      %p379 = pnand %p377, %p378
      %p380 = pneg %p379
      // Predicated region
      $region57: #{end2end_forward.1} parent=5 // pred_check
        _
      $region58: #{end2end_forward.1} parent=5 // pred_check_branch
        %382 = sbr.rel (%p379) target = $region60
      $region59: #{end2end_forward.1} parent=5 // pred_region
        %s383 = ssub.s32 %s19, 1
        // Predicated region
        $region61: #{end2end_forward.1} parent=59 // pred_check
          %p384 = pneg %p40
        $region62: #{end2end_forward.1} parent=59 // pred_check_branch
          %386 = sbr.rel (%p384) target = $region64
        $region63: #{end2end_forward.1} parent=59 // pred_region
          %387 = dma.done [#allocation6], 16
        $region64: #{end2end_forward.1} parent=59 // pred_fallthru
          _
        %388 = sfence
        %p389 = pneg %p40
        %p390 = pneg %p37
        %p391 = pneg %p61
        %p392 = pneg %p58
        %p393 = pneg %p82
        %p394 = pneg %p79
        %p395 = pneg %p103
        %p396 = pneg %p100
        %p397 = pneg %p124
        %p398 = pneg %p121
        %p399 = pneg %p145
        %p400 = pneg %p142
        %p401 = scmp.lt.s32.totalorder %s24, 2
        %s402 = scalar_select %p401, %s24, 2
        %s403 = smul.addr %s402, 2
        %s404 = smul.addr %s403, 4
        %s405 = scalar_lea.vmem %s6, %s404
        %p406 = pneg %p171
        %p407 = pneg %p168
        %p408 = scmp.lt.s32.totalorder %s24, 2
        %s409 = scalar_select %p408, %s24, 2
        %s410 = smul.addr %s409, 2
        %s411 = smul.addr %s410, 8
        %s412 = scalar_lea.vmem %s7, %s411
        %p413 = pneg %p197
        %p414 = pneg %p194
        %p415 = scmp.lt.s32.totalorder %s24, 2
        %s416 = scalar_select %p415, %s24, 2
        %s417 = smul.addr %s416, 2
        %s418 = smul.addr %s417, 2
        %s419 = scalar_lea.vmem %s8, %s418
        %p420 = pneg %p223
        %p421 = pneg %p220
        %p422 = scmp.lt.s32.totalorder %s24, 2
        %s423 = scalar_select %p422, %s24, 2
        %s424 = smul.addr %s423, 4
        %s425 = scalar_lea.vmem %s9, %s424
        %p426 = pneg %p249
        %p427 = pneg %p246
        %p428 = pneg %p275
        %p429 = pneg %p272
        %p430 = scmp.lt.s32.totalorder %s24, 2
        %s431 = scalar_select %p430, %s24, 2
        %s432 = smul.addr %s431, 4
        %s433 = smul.addr %s432, 4
        %s434 = scalar_lea.vmem %s10, %s433
        %p435 = pneg %p301
        %p436 = pneg %p298
        %p437 = scmp.lt.s32.totalorder %s24, 2
        %s438 = scalar_select %p437, %s24, 2
        %s439 = smul.addr %s438, 4
        %s440 = smul.addr %s439, 4
        %s441 = scalar_lea.vmem %s11, %s440
        %p442 = scmp.lt.s32.totalorder %s24, 2
        %s443 = scalar_select %p442, %s24, 2
        %s444 = smul.addr %s443, 2
        %s445 = smul.addr %s444, 4
        %s446 = scalar_lea.vmem %s6, %s445
        %p447 = scmp.lt.s32.totalorder %s24, 2
        %s448 = scalar_select %p447, %s24, 2
        %s449 = smul.addr %s448, 2
        %s450 = smul.addr %s449, 8
        %s451 = scalar_lea.vmem %s7, %s450
        %p452 = scmp.lt.s32.totalorder %s24, 2
        %s453 = scalar_select %p452, %s24, 2
        %s454 = smul.addr %s453, 2
        %s455 = smul.addr %s454, 2
        %s456 = scalar_lea.vmem %s8, %s455
        %p457 = scmp.lt.s32.totalorder %s24, 2
        %s458 = scalar_select %p457, %s24, 2
        %s459 = smul.addr %s458, 4
        %s460 = scalar_lea.vmem %s9, %s459
        %p461 = scmp.lt.s32.totalorder %s24, 2
        %s462 = scalar_select %p461, %s24, 2
        %s463 = smul.addr %s462, 4
        %s464 = smul.addr %s463, 4
        %s465 = scalar_lea.vmem %s10, %s464
        %p466 = scmp.lt.s32.totalorder %s24, 2
        %s467 = scalar_select %p466, %s24, 2
        %s468 = smul.addr %s467, 4
        %s469 = smul.addr %s468, 4
        %s470 = scalar_lea.vmem %s11, %s469
        %p472 = scmp.eq.s32.totalorder %s24, 0
        // Predicated region
        $region65: #{end2end_forward.1} parent=59 // pred_check
          %p473 = pneg %p472
        $region66: #{end2end_forward.1} parent=59 // pred_check_branch
          %475 = sbr.rel (%p473) target = $region68
        $region67: #{end2end_forward.1} parent=59 // pred_region
          %v476 = vld [vmem:[%s1] sm:$0xff]
          %v477 = vld [vmem:[%s1 + $0x8] sm:$0xff]
          %478 = vst [vmem:[#allocation2] sm:$0xff] %v476
          %479 = vst [vmem:[#allocation2 + $0x8] sm:$0xff] %v477
        $region68: #{end2end_forward.1} parent=59 // pred_fallthru
          _
        %s480 = sld [smem:[#allocation5 + %s24]]
        %v481 = vld [vmem:[#allocation2] sm:$0xff]
        %v482 = vld [vmem:[#allocation2 + $0x8] sm:$0xff]
        %v483 = vld [vmem:[%s3] sm:$0xff]
        %v484 = vld [vmem:[%s3 + $0x8] sm:$0xff]
        %v485 = vmul.f32 %v483, %v481
        %v486 = vmul.f32 %v484, %v482
        %v489 = vcombine.high %v485, %v485
        %v490 = vcombine.high %v486, %v486
        %vm493 = vcmask 1043456
        %v494 = vsel %vm493, %v485, 0.0
        %v495 = vrot.slane %v494, 4
        %v496 = vadd.f32 %v494, %v495
        %v497 = vrot.slane %v496, 2
        %v498 = vadd.f32 %v496, %v497
        %v499 = vrot.slane %v498, 1
        %v500 = vadd.f32 %v498, %v499
        %v501 = vsel %vm493, %v489, 0.0
        %v502 = vrot.slane %v501, 4
        %v503 = vadd.f32 %v501, %v502
        %v504 = vrot.slane %v503, 2
        %v505 = vadd.f32 %v503, %v504
        %v506 = vrot.slane %v505, 1
        %v507 = vadd.f32 %v505, %v506
        %v508 = vsel %vm493, %v486, 0.0
        %v509 = vrot.slane %v508, 4
        %v510 = vadd.f32 %v508, %v509
        %v511 = vrot.slane %v510, 2
        %v512 = vadd.f32 %v510, %v511
        %v513 = vrot.slane %v512, 1
        %v514 = vadd.f32 %v512, %v513
        %v515 = vsel %vm493, %v490, 0.0
        %v516 = vrot.slane %v515, 4
        %v517 = vadd.f32 %v515, %v516
        %v518 = vrot.slane %v517, 2
        %v519 = vadd.f32 %v517, %v518
        %v520 = vrot.slane %v519, 1
        %v521 = vadd.f32 %v519, %v520
        %v522 = vld [vmem:[%s2] sm:$0xf]
        %v524 = vlaneseq
        %v525 = vshrl.u32 %v524, 7
        %v526 = vsub.s32 0, %v525
        %v527 = vrot.slane %v522, %v526
        %v528 = vlaneseq
        %v529 = vshrl.u32 %v528, 7
        %v530 = vsub.s32 1, %v529
        %v531 = vrot.slane %v522, %v530
        %v532 = vlaneseq
        %v533 = vshrl.u32 %v532, 7
        %v534 = vsub.s32 2, %v533
        %v535 = vrot.slane %v522, %v534
        %v536 = vlaneseq
        %v537 = vshrl.u32 %v536, 7
        %v538 = vsub.s32 3, %v537
        %v539 = vrot.slane %v522, %v538
        %v544 = vsub.f32 %v500, %v527
        %v545 = vsub.f32 %v507, %v531
        %v546 = vsub.f32 %v514, %v535
        %v547 = vsub.f32 %v521, %v539
        %v548 = vld [vmem:[%s4] sm:$0xf]
        %v550 = vlaneseq
        %v551 = vshrl.u32 %v550, 7
        %v552 = vsub.s32 0, %v551
        %v553 = vrot.slane %v548, %v552
        %v554 = vlaneseq
        %v555 = vshrl.u32 %v554, 7
        %v556 = vsub.s32 1, %v555
        %v557 = vrot.slane %v548, %v556
        %v558 = vlaneseq
        %v559 = vshrl.u32 %v558, 7
        %v560 = vsub.s32 2, %v559
        %v561 = vrot.slane %v548, %v560
        %v562 = vlaneseq
        %v563 = vshrl.u32 %v562, 7
        %v564 = vsub.s32 3, %v563
        %v565 = vrot.slane %v548, %v564
        %v570 = vmul.f32 %v544, %v553
        %v571 = vmul.f32 %v545, %v557
        %v572 = vmul.f32 %v546, %v561
        %v573 = vmul.f32 %v547, %v565
        %v574 = vlaneseq
        %v575 = vshrl.u32 %v574, 7
        %v576 = vsub.s32 0, %v575
        %v577 = vrot.slane %v570, %v576
        %v578 = vlaneseq
        %v579 = vshrl.u32 %v578, 7
        %v580 = vsub.s32 0, %v579
        %v581 = vrot.slane %v571, %v580
        %v582 = vlaneseq
        %v583 = vshrl.u32 %v582, 7
        %v584 = vsub.s32 0, %v583
        %v585 = vrot.slane %v572, %v584
        %v586 = vlaneseq
        %v587 = vshrl.u32 %v586, 7
        %v588 = vsub.s32 0, %v587
        %v589 = vrot.slane %v573, %v588
        %v594 = vcombine.low %v577, %v581
        %v595 = vcombine.low %v585, %v589
        %v598 = vmul.f32 %v483, %v594
        %v599 = vmul.f32 %v484, %v595
        %v600 = vstv %s480
        %v601 = vmul.f32 %v600, %v598
        %v602 = vmul.f32 %v600, %v599
        %v603 = vsub.f32 %v481, %v601
        %v604 = vsub.f32 %v482, %v602
        %v607 = vcombine.high %v603, %v603
        %v608 = vcombine.high %v604, %v604
        %611 = vrot.lane.b32.xlu0 %v603, 17
        %v612 = vpop.permute.xlu0 %611
        %613 = vrot.lane.b32.xlu0 %v607, 17
        %v614 = vpop.permute.xlu0 %613
        %615 = vrot.lane.b32.xlu0 %v604, 17
        %v616 = vpop.permute.xlu0 %615
        %617 = vrot.lane.b32.xlu0 %v608, 17
        %v618 = vpop.permute.xlu0 %617
        %v619 = vlaneseq
        %v620 = vand.u32 %v619, 127
        %vm621 = vcmp.lt.s32.totalorder %v620, 17
        %v622 = vsel %vm621, %v616, %v618
        %v623 = vsel %vm621, %v614, %v616
        %v624 = vsel %vm621, %v612, %v614
        %v625 = vsel %vm621, %v618, %v612
        %v626 = vld [vmem:[%s5] ss:$8 sm:$0xf]
        %v628 = vlaneseq
        %v629 = vshrl.u32 %v628, 7
        %v630 = vsub.s32 0, %v629
        %v631 = vrot.slane %v626, %v630
        %v632 = vlaneseq
        %v633 = vshrl.u32 %v632, 7
        %v634 = vsub.s32 1, %v633
        %v635 = vrot.slane %v626, %v634
        %v636 = vlaneseq
        %v637 = vshrl.u32 %v636, 7
        %v638 = vsub.s32 2, %v637
        %v639 = vrot.slane %v626, %v638
        %v640 = vlaneseq
        %v641 = vshrl.u32 %v640, 7
        %v642 = vsub.s32 3, %v641
        %v643 = vrot.slane %v626, %v642
        %v648 = vmul.f32 %v625, %v631
        %v649 = vmul.f32 %v624, %v635
        %v650 = vmul.f32 %v623, %v639
        %v651 = vmul.f32 %v622, %v643
        %652 = vst [vmem:[#allocation3] sm:$0xf] %v648
        %653 = vst [vmem:[#allocation3 + $0x8] sm:$0xf] %v649
        %654 = vst [vmem:[#allocation3 + $0x10] sm:$0xf] %v650
        %655 = vst [vmem:[#allocation3 + $0x18] sm:$0xf] %v651
        %656 = vrot.lane.b32.xlu0 %v603, 16
        %v657 = vpop.permute.xlu0 %656
        %658 = vrot.lane.b32.xlu0 %v607, 16
        %v659 = vpop.permute.xlu0 %658
        %660 = vrot.lane.b32.xlu0 %v604, 16
        %v661 = vpop.permute.xlu0 %660
        %662 = vrot.lane.b32.xlu0 %v608, 16
        %v663 = vpop.permute.xlu0 %662
        %vm664 = vcmp.lt.s32.totalorder %v620, 16
        %v665 = vsel %vm664, %v661, %v663
        %v666 = vsel %vm664, %v659, %v661
        %v667 = vsel %vm664, %v657, %v659
        %v668 = vsel %vm664, %v663, %v657
        %s669 = scalar_lea.vmem %s5, 1
        %v670 = vld [vmem:[%s669] ss:$8 sm:$0xf]
        %v672 = vlaneseq
        %v673 = vshrl.u32 %v672, 7
        %v674 = vsub.s32 0, %v673
        %v675 = vrot.slane %v670, %v674
        %v676 = vlaneseq
        %v677 = vshrl.u32 %v676, 7
        %v678 = vsub.s32 1, %v677
        %v679 = vrot.slane %v670, %v678
        %v680 = vlaneseq
        %v681 = vshrl.u32 %v680, 7
        %v682 = vsub.s32 2, %v681
        %v683 = vrot.slane %v670, %v682
        %v684 = vlaneseq
        %v685 = vshrl.u32 %v684, 7
        %v686 = vsub.s32 3, %v685
        %v687 = vrot.slane %v670, %v686
        %v692 = vmul.f32 %v668, %v675
        %v693 = vmul.f32 %v667, %v679
        %v694 = vmul.f32 %v666, %v683
        %v695 = vmul.f32 %v665, %v687
        %v700 = vrot.slane %v692, 4
        %v701 = vrot.slane %v693, 4
        %v702 = vrot.slane %v694, 4
        %v703 = vrot.slane %v695, 4
        %708 = vst [vmem:[#allocation3] sm:$0xf0] %v700
        %709 = vst [vmem:[#allocation3 + $0x8] sm:$0xf0] %v701
        %710 = vst [vmem:[#allocation3 + $0x10] sm:$0xf0] %v702
        %711 = vst [vmem:[#allocation3 + $0x18] sm:$0xf0] %v703
        %712 = vrot.lane.b32.xlu0 %v603, 15
        %v713 = vpop.permute.xlu0 %712
        %714 = vrot.lane.b32.xlu0 %v607, 15
        %v715 = vpop.permute.xlu0 %714
        %716 = vrot.lane.b32.xlu0 %v604, 15
        %v717 = vpop.permute.xlu0 %716
        %718 = vrot.lane.b32.xlu0 %v608, 15
        %v719 = vpop.permute.xlu0 %718
        %vm720 = vcmp.lt.s32.totalorder %v620, 15
        %v721 = vsel %vm720, %v717, %v719
        %v722 = vsel %vm720, %v715, %v717
        %v723 = vsel %vm720, %v713, %v715
        %v724 = vsel %vm720, %v719, %v713
        %s725 = scalar_lea.vmem %s5, 2
        %v726 = vld [vmem:[%s725] ss:$8 sm:$0xf]
        %v728 = vlaneseq
        %v729 = vshrl.u32 %v728, 7
        %v730 = vsub.s32 0, %v729
        %v731 = vrot.slane %v726, %v730
        %v732 = vlaneseq
        %v733 = vshrl.u32 %v732, 7
        %v734 = vsub.s32 1, %v733
        %v735 = vrot.slane %v726, %v734
        %v736 = vlaneseq
        %v737 = vshrl.u32 %v736, 7
        %v738 = vsub.s32 2, %v737
        %v739 = vrot.slane %v726, %v738
        %v740 = vlaneseq
        %v741 = vshrl.u32 %v740, 7
        %v742 = vsub.s32 3, %v741
        %v743 = vrot.slane %v726, %v742
        %v748 = vmul.f32 %v724, %v731
        %v749 = vmul.f32 %v723, %v735
        %v750 = vmul.f32 %v722, %v739
        %v751 = vmul.f32 %v721, %v743
        %752 = vst [vmem:[#allocation3 + $0x20] sm:$0xf] %v748
        %753 = vst [vmem:[#allocation3 + $0x28] sm:$0xf] %v749
        %754 = vst [vmem:[#allocation3 + $0x30] sm:$0xf] %v750
        %755 = vst [vmem:[#allocation3 + $0x38] sm:$0xf] %v751
        %756 = vrot.lane.b32.xlu0 %v603, 1
        %v757 = vpop.permute.xlu0 %756
        %758 = vrot.lane.b32.xlu0 %v607, 1
        %v759 = vpop.permute.xlu0 %758
        %760 = vrot.lane.b32.xlu0 %v604, 1
        %v761 = vpop.permute.xlu0 %760
        %762 = vrot.lane.b32.xlu0 %v608, 1
        %v763 = vpop.permute.xlu0 %762
        %vm764 = vcmp.lt.s32.totalorder %v620, 1
        %v765 = vsel %vm764, %v761, %v763
        %v766 = vsel %vm764, %v759, %v761
        %v767 = vsel %vm764, %v757, %v759
        %v768 = vsel %vm764, %v763, %v757
        %s769 = scalar_lea.vmem %s5, 3
        %v770 = vld [vmem:[%s769] ss:$8 sm:$0xf]
        %v772 = vlaneseq
        %v773 = vshrl.u32 %v772, 7
        %v774 = vsub.s32 0, %v773
        %v775 = vrot.slane %v770, %v774
        %v776 = vlaneseq
        %v777 = vshrl.u32 %v776, 7
        %v778 = vsub.s32 1, %v777
        %v779 = vrot.slane %v770, %v778
        %v780 = vlaneseq
        %v781 = vshrl.u32 %v780, 7
        %v782 = vsub.s32 2, %v781
        %v783 = vrot.slane %v770, %v782
        %v784 = vlaneseq
        %v785 = vshrl.u32 %v784, 7
        %v786 = vsub.s32 3, %v785
        %v787 = vrot.slane %v770, %v786
        %v792 = vmul.f32 %v768, %v775
        %v793 = vmul.f32 %v767, %v779
        %v794 = vmul.f32 %v766, %v783
        %v795 = vmul.f32 %v765, %v787
        %v800 = vrot.slane %v792, 4
        %v801 = vrot.slane %v793, 4
        %v802 = vrot.slane %v794, 4
        %v803 = vrot.slane %v795, 4
        %808 = vst [vmem:[#allocation3 + $0x20] sm:$0xf0] %v800
        %809 = vst [vmem:[#allocation3 + $0x28] sm:$0xf0] %v801
        %810 = vst [vmem:[#allocation3 + $0x30] sm:$0xf0] %v802
        %811 = vst [vmem:[#allocation3 + $0x38] sm:$0xf0] %v803
        %812 = vst [vmem:[#allocation3 + $0x40] sm:$0xf] %v603
        %813 = vst [vmem:[#allocation3 + $0x48] sm:$0xf] %v607
        %814 = vst [vmem:[#allocation3 + $0x50] sm:$0xf] %v604
        %815 = vst [vmem:[#allocation3 + $0x58] sm:$0xf] %v608
        %816 = vrot.lane.b32.xlu0 %v603, 127
        %v817 = vpop.permute.xlu0 %816
        %818 = vrot.lane.b32.xlu0 %v607, 127
        %v819 = vpop.permute.xlu0 %818
        %820 = vrot.lane.b32.xlu0 %v604, 127
        %v821 = vpop.permute.xlu0 %820
        %822 = vrot.lane.b32.xlu0 %v608, 127
        %v823 = vpop.permute.xlu0 %822
        %vm824 = vcmp.lt.s32.totalorder %v620, 127
        %v825 = vsel %vm824, %v821, %v823
        %v826 = vsel %vm824, %v819, %v821
        %v827 = vsel %vm824, %v817, %v819
        %v828 = vsel %vm824, %v823, %v817
        %s829 = scalar_lea.vmem %s5, 5
        %v830 = vld [vmem:[%s829] ss:$8 sm:$0xf]
        %v832 = vlaneseq
        %v833 = vshrl.u32 %v832, 7
        %v834 = vsub.s32 0, %v833
        %v835 = vrot.slane %v830, %v834
        %v836 = vlaneseq
        %v837 = vshrl.u32 %v836, 7
        %v838 = vsub.s32 1, %v837
        %v839 = vrot.slane %v830, %v838
        %v840 = vlaneseq
        %v841 = vshrl.u32 %v840, 7
        %v842 = vsub.s32 2, %v841
        %v843 = vrot.slane %v830, %v842
        %v844 = vlaneseq
        %v845 = vshrl.u32 %v844, 7
        %v846 = vsub.s32 3, %v845
        %v847 = vrot.slane %v830, %v846
        %v852 = vmul.f32 %v827, %v835
        %v853 = vmul.f32 %v826, %v839
        %v854 = vmul.f32 %v825, %v843
        %v855 = vmul.f32 %v828, %v847
        %v860 = vrot.slane %v852, 4
        %v861 = vrot.slane %v853, 4
        %v862 = vrot.slane %v854, 4
        %v863 = vrot.slane %v855, 4
        %868 = vst [vmem:[#allocation3 + $0x40] sm:$0xf0] %v860
        %869 = vst [vmem:[#allocation3 + $0x48] sm:$0xf0] %v861
        %870 = vst [vmem:[#allocation3 + $0x50] sm:$0xf0] %v862
        %871 = vst [vmem:[#allocation3 + $0x58] sm:$0xf0] %v863
        %872 = vrot.lane.b32.xlu0 %v603, 113
        %v873 = vpop.permute.xlu0 %872
        %874 = vrot.lane.b32.xlu0 %v607, 113
        %v875 = vpop.permute.xlu0 %874
        %876 = vrot.lane.b32.xlu0 %v604, 113
        %v877 = vpop.permute.xlu0 %876
        %878 = vrot.lane.b32.xlu0 %v608, 113
        %v879 = vpop.permute.xlu0 %878
        %vm880 = vcmp.lt.s32.totalorder %v620, 113
        %v881 = vsel %vm880, %v877, %v879
        %v882 = vsel %vm880, %v875, %v877
        %v883 = vsel %vm880, %v873, %v875
        %v884 = vsel %vm880, %v879, %v873
        %s885 = scalar_lea.vmem %s5, 6
        %v886 = vld [vmem:[%s885] ss:$8 sm:$0xf]
        %v888 = vlaneseq
        %v889 = vshrl.u32 %v888, 7
        %v890 = vsub.s32 0, %v889
        %v891 = vrot.slane %v886, %v890
        %v892 = vlaneseq
        %v893 = vshrl.u32 %v892, 7
        %v894 = vsub.s32 1, %v893
        %v895 = vrot.slane %v886, %v894
        %v896 = vlaneseq
        %v897 = vshrl.u32 %v896, 7
        %v898 = vsub.s32 2, %v897
        %v899 = vrot.slane %v886, %v898
        %v900 = vlaneseq
        %v901 = vshrl.u32 %v900, 7
        %v902 = vsub.s32 3, %v901
        %v903 = vrot.slane %v886, %v902
        %v908 = vmul.f32 %v883, %v891
        %v909 = vmul.f32 %v882, %v895
        %v910 = vmul.f32 %v881, %v899
        %v911 = vmul.f32 %v884, %v903
        %912 = vst [vmem:[#allocation3 + $0x60] sm:$0xf] %v908
        %913 = vst [vmem:[#allocation3 + $0x68] sm:$0xf] %v909
        %914 = vst [vmem:[#allocation3 + $0x70] sm:$0xf] %v910
        %915 = vst [vmem:[#allocation3 + $0x78] sm:$0xf] %v911
        %916 = vrot.lane.b32.xlu0 %v603, 112
        %v917 = vpop.permute.xlu0 %916
        %918 = vrot.lane.b32.xlu0 %v607, 112
        %v919 = vpop.permute.xlu0 %918
        %920 = vrot.lane.b32.xlu0 %v604, 112
        %v921 = vpop.permute.xlu0 %920
        %922 = vrot.lane.b32.xlu0 %v608, 112
        %v923 = vpop.permute.xlu0 %922
        %vm924 = vcmp.lt.s32.totalorder %v620, 112
        %v925 = vsel %vm924, %v921, %v923
        %v926 = vsel %vm924, %v919, %v921
        %v927 = vsel %vm924, %v917, %v919
        %v928 = vsel %vm924, %v923, %v917
        %s929 = scalar_lea.vmem %s5, 7
        %v930 = vld [vmem:[%s929] ss:$8 sm:$0xf]
        %v932 = vlaneseq
        %v933 = vshrl.u32 %v932, 7
        %v934 = vsub.s32 0, %v933
        %v935 = vrot.slane %v930, %v934
        %v936 = vlaneseq
        %v937 = vshrl.u32 %v936, 7
        %v938 = vsub.s32 1, %v937
        %v939 = vrot.slane %v930, %v938
        %v940 = vlaneseq
        %v941 = vshrl.u32 %v940, 7
        %v942 = vsub.s32 2, %v941
        %v943 = vrot.slane %v930, %v942
        %v944 = vlaneseq
        %v945 = vshrl.u32 %v944, 7
        %v946 = vsub.s32 3, %v945
        %v947 = vrot.slane %v930, %v946
        %v952 = vmul.f32 %v927, %v935
        %v953 = vmul.f32 %v926, %v939
        %v954 = vmul.f32 %v925, %v943
        %v955 = vmul.f32 %v928, %v947
        %v960 = vrot.slane %v952, 4
        %v961 = vrot.slane %v953, 4
        %v962 = vrot.slane %v954, 4
        %v963 = vrot.slane %v955, 4
        %968 = vst [vmem:[#allocation3 + $0x60] sm:$0xf0] %v960
        %969 = vst [vmem:[#allocation3 + $0x68] sm:$0xf0] %v961
        %970 = vst [vmem:[#allocation3 + $0x70] sm:$0xf0] %v962
        %971 = vst [vmem:[#allocation3 + $0x78] sm:$0xf0] %v963
        %972 = vrot.lane.b32.xlu0 %v603, 111
        %v973 = vpop.permute.xlu0 %972
        %974 = vrot.lane.b32.xlu0 %v607, 111
        %v975 = vpop.permute.xlu0 %974
        %976 = vrot.lane.b32.xlu0 %v604, 111
        %v977 = vpop.permute.xlu0 %976
        %978 = vrot.lane.b32.xlu0 %v608, 111
        %v979 = vpop.permute.xlu0 %978
        %vm980 = vcmp.lt.s32.totalorder %v620, 111
        %v981 = vsel %vm980, %v977, %v979
        %v982 = vsel %vm980, %v975, %v977
        %v983 = vsel %vm980, %v973, %v975
        %v984 = vsel %vm980, %v979, %v973
        %s985 = scalar_lea.vmem %s5, 32
        %v986 = vld [vmem:[%s985] ss:$8 sm:$0xf]
        %v988 = vlaneseq
        %v989 = vshrl.u32 %v988, 7
        %v990 = vsub.s32 0, %v989
        %v991 = vrot.slane %v986, %v990
        %v992 = vlaneseq
        %v993 = vshrl.u32 %v992, 7
        %v994 = vsub.s32 1, %v993
        %v995 = vrot.slane %v986, %v994
        %v996 = vlaneseq
        %v997 = vshrl.u32 %v996, 7
        %v998 = vsub.s32 2, %v997
        %v999 = vrot.slane %v986, %v998
        %v1000 = vlaneseq
        %v1001 = vshrl.u32 %v1000, 7
        %v1002 = vsub.s32 3, %v1001
        %v1003 = vrot.slane %v986, %v1002
        %v1008 = vmul.f32 %v983, %v991
        %v1009 = vmul.f32 %v982, %v995
        %v1010 = vmul.f32 %v981, %v999
        %v1011 = vmul.f32 %v984, %v1003
        %1012 = vst [vmem:[#allocation3 + $0x80] sm:$0xf] %v1008
        %1013 = vst [vmem:[#allocation3 + $0x88] sm:$0xf] %v1009
        %1014 = vst [vmem:[#allocation3 + $0x90] sm:$0xf] %v1010
        %1015 = vst [vmem:[#allocation3 + $0x98] sm:$0xf] %v1011
        %v1016 = vld [vmem:[%s446] sm:$0xf]
        %v1017 = vld [vmem:[%s446 + $0x4] sm:$0xf]
        %v1018 = vld [vmem:[#allocation3] sm:$0xff]
        %v1019 = vld [vmem:[#allocation3 + $0x8] sm:$0xff]
        %v1020 = vld [vmem:[#allocation3 + $0x10] sm:$0xff]
        %v1021 = vld [vmem:[#allocation3 + $0x18] sm:$0xff]
        %v1022 = vld [vmem:[#allocation3 + $0x20] sm:$0xff]
        %v1023 = vld [vmem:[#allocation3 + $0x28] sm:$0xff]
        %v1024 = vld [vmem:[#allocation3 + $0x30] sm:$0xff]
        %v1025 = vld [vmem:[#allocation3 + $0x38] sm:$0xff]
        %v1026 = vld [vmem:[#allocation3 + $0x40] sm:$0xff]
        %v1027 = vld [vmem:[#allocation3 + $0x48] sm:$0xff]
        %v1028 = vld [vmem:[#allocation3 + $0x50] sm:$0xff]
        %v1029 = vld [vmem:[#allocation3 + $0x58] sm:$0xff]
        %v1030 = vld [vmem:[#allocation3 + $0x60] sm:$0xff]
        %v1031 = vld [vmem:[#allocation3 + $0x68] sm:$0xff]
        %v1032 = vld [vmem:[#allocation3 + $0x70] sm:$0xff]
        %v1033 = vld [vmem:[#allocation3 + $0x78] sm:$0xff]
        %v1034 = vld [vmem:[#allocation3 + $0x80] sm:$0xf]
        %v1035 = vld [vmem:[#allocation3 + $0x88] sm:$0xf]
        %v1036 = vld [vmem:[#allocation3 + $0x90] sm:$0xf]
        %v1037 = vld [vmem:[#allocation3 + $0x98] sm:$0xf]
        %v1038 = vpack.c.bf16 %v1022, %v1018
        %v1039 = vpack.c.bf16 %v1023, %v1019
        %v1040 = vpack.c.bf16 %v1024, %v1020
        %v1041 = vpack.c.bf16 %v1025, %v1021
        %v1042 = vpack.c.bf16 %v1030, %v1026
        %v1043 = vpack.c.bf16 %v1031, %v1027
        %v1044 = vpack.c.bf16 %v1032, %v1028
        %v1045 = vpack.c.bf16 %v1033, %v1029
        %v1046 = vpack.c.bf16 %v1034, %v1034
        %v1047 = vpack.c.bf16 %v1035, %v1035
        %v1048 = vpack.c.bf16 %v1036, %v1036
        %v1049 = vpack.c.bf16 %v1037, %v1037
        %v1050 = vld [vmem:[%s451] sm:$0xff]
        %v1051 = vld [vmem:[%s451 + $0x8] sm:$0xff]
        %1053 = vset.pattern.permute.xlu0 0
        %1054 = vperm.xlu0 %1053, %v1050
        %v1055 = vpop.permute.xlu0 %1054
        %1058 = vset.pattern.permute.xlu0 0
        %1059 = vperm.xlu0 %1058, %v1051
        %v1060 = vpop.permute.xlu0 %1059
        %v1064 = vunpack.c.l.b16 %v1016
        %v1065 = vunpack.c.l.b16 %v1017
        %v1066 = vpack.c.b16 %v1065, %v1064
        %vm1067 = vcmask 293888
        %v1069 = vsel %vm1067, %v1066, 0
        %vm1071 = vcmask 1041408
        %v1073 = vsel %vm1071, %v1046, 0
        %v1076 = vsel %vm1071, %v1047, 0
        %v1079 = vsel %vm1071, %v1048, 0
        %v1082 = vsel %vm1071, %v1049, 0
        %1084 = vmatprep.subr.bf16.mxu0 0
        %1085 = vmatpush1.bf16.msra.mxu0 0
        %1086 = vmatprep.subr.bf16.mxu0 0
        %1087 = vmatpush1.bf16.msra.mxu0 0
        %1088 = vmatprep.subr.bf16.mxu0 0
        %1089 = vmatpush1.bf16.msra.mxu0 0
        %1090 = vmatprep.subr.bf16.mxu0 0
        %1091 = vmatpush1.bf16.msra.mxu0 0
        %1092 = vmatprep.subr.bf16.mxu0 0
        %1093 = vmatpush1.bf16.msra.mxu0 0
        %1094 = vmatprep.subr.bf16.mxu0 %v1076
        %1095 = vmatpush1.bf16.msra.mxu0 %v1073
        %1096 = vmatprep.subr.bf16.mxu0 %v1043
        %1097 = vmatpush1.bf16.msra.mxu0 %v1042
        %1098 = vmatprep.subr.bf16.mxu0 %v1039
        %1099 = vmatpush1.bf16.msra.mxu0 %v1038
        %1100 = vmatprep.subr.bf16.mxu0 0
        %1101 = vmatpush2.bf16.msra.mxu0 0
        %1102 = vmatprep.subr.bf16.mxu0 0
        %1103 = vmatpush2.bf16.msra.mxu0 0
        %1104 = vmatprep.subr.bf16.mxu0 0
        %1105 = vmatpush2.bf16.msra.mxu0 0
        %1106 = vmatprep.subr.bf16.mxu0 0
        %1107 = vmatpush2.bf16.msra.mxu0 0
        %1108 = vmatprep.subr.bf16.mxu0 0
        %1109 = vmatpush2.bf16.msra.mxu0 0
        %1110 = vmatprep.subr.bf16.mxu0 0
        %1111 = vmatpush2.bf16.msra.mxu0 0
        %1112 = vmatprep.subr.bf16.mxu0 0
        %1113 = vmatpush2.bf16.msra.mxu0 0
        %1114 = vmatprep.subr.bf16.mxu0 0
        %1115 = vmatpush2.bf16.msra.mxu0 0
        %1116 = vmatprep.mubr.bf16.mxu0 0
        %1117 = vmatmul.mubr.bf16.gmra.mxu0 %v1069
        %v1118 = vpop.f32.mrf.mxu0
        %v1119 = vadd.f32 %v1055, %v1118
        %v1120 = vpop.f32.mrf.mxu0
        %v1121 = vadd.f32 %v1055, %v1120
        %v1122 = vpop.f32.mrf.mxu0
        %v1123 = vadd.f32 %v1060, %v1122
        %v1124 = vpop.f32.mrf.mxu0
        %v1125 = vadd.f32 %v1060, %v1124
        %1126 = vdwg.mxu0
        %1127 = vmatprep.subr.bf16.mxu0 0
        %1128 = vmatpush1.bf16.msra.mxu0 0
        %1129 = vmatprep.subr.bf16.mxu0 0
        %1130 = vmatpush1.bf16.msra.mxu0 0
        %1131 = vmatprep.subr.bf16.mxu0 0
        %1132 = vmatpush1.bf16.msra.mxu0 0
        %1133 = vmatprep.subr.bf16.mxu0 0
        %1134 = vmatpush1.bf16.msra.mxu0 0
        %1135 = vmatprep.subr.bf16.mxu0 0
        %1136 = vmatpush1.bf16.msra.mxu0 0
        %1137 = vmatprep.subr.bf16.mxu0 %v1082
        %1138 = vmatpush1.bf16.msra.mxu0 %v1079
        %1139 = vmatprep.subr.bf16.mxu0 %v1045
        %1140 = vmatpush1.bf16.msra.mxu0 %v1044
        %1141 = vmatprep.subr.bf16.mxu0 %v1041
        %1142 = vmatpush1.bf16.msra.mxu0 %v1040
        %1143 = vmatprep.subr.bf16.mxu0 0
        %1144 = vmatpush2.bf16.msra.mxu0 0
        %1145 = vmatprep.subr.bf16.mxu0 0
        %1146 = vmatpush2.bf16.msra.mxu0 0
        %1147 = vmatprep.subr.bf16.mxu0 0
        %1148 = vmatpush2.bf16.msra.mxu0 0
        %1149 = vmatprep.subr.bf16.mxu0 0
        %1150 = vmatpush2.bf16.msra.mxu0 0
        %1151 = vmatprep.subr.bf16.mxu0 0
        %1152 = vmatpush2.bf16.msra.mxu0 0
        %1153 = vmatprep.subr.bf16.mxu0 0
        %1154 = vmatpush2.bf16.msra.mxu0 0
        %1155 = vmatprep.subr.bf16.mxu0 0
        %1156 = vmatpush2.bf16.msra.mxu0 0
        %1157 = vmatprep.subr.bf16.mxu0 0
        %1158 = vmatpush2.bf16.msra.mxu0 0
        %1159 = vmatprep.mubr.bf16.mxu0 0
        %1160 = vmatmul.mubr.bf16.gmra.mxu0 %v1069
        %v1161 = vpop.f32.mrf.mxu0
        %v1162 = vadd.f32 %v1055, %v1161
        %v1163 = vpop.f32.mrf.mxu0
        %v1164 = vadd.f32 %v1055, %v1163
        %v1165 = vpop.f32.mrf.mxu0
        %v1166 = vadd.f32 %v1060, %v1165
        %v1167 = vpop.f32.mrf.mxu0
        %v1168 = vadd.f32 %v1060, %v1167
        %1169 = vdwg.mxu0
        %v1170 = vmax.f32 %v1119, 0.0
        %v1171 = vmax.f32 %v1121, 0.0
        %v1172 = vmax.f32 %v1162, 0.0
        %v1173 = vmax.f32 %v1164, 0.0
        %v1174 = vmax.f32 %v1123, 0.0
        %v1175 = vmax.f32 %v1125, 0.0
        %v1176 = vmax.f32 %v1166, 0.0
        %v1177 = vmax.f32 %v1168, 0.0
        %1178 = vrot.lane.b32.xlu0 %v1170, 17
        %v1179 = vpop.permute.xlu0 %1178
        %1180 = vrot.lane.b32.xlu0 %v1174, 17
        %v1181 = vpop.permute.xlu0 %1180
        %1182 = vrot.lane.b32.xlu0 %v1171, 17
        %v1183 = vpop.permute.xlu0 %1182
        %1184 = vrot.lane.b32.xlu0 %v1175, 17
        %v1185 = vpop.permute.xlu0 %1184
        %1186 = vrot.lane.b32.xlu0 %v1172, 17
        %v1187 = vpop.permute.xlu0 %1186
        %1188 = vrot.lane.b32.xlu0 %v1176, 17
        %v1189 = vpop.permute.xlu0 %1188
        %1190 = vrot.lane.b32.xlu0 %v1173, 17
        %v1191 = vpop.permute.xlu0 %1190
        %1192 = vrot.lane.b32.xlu0 %v1177, 17
        %v1193 = vpop.permute.xlu0 %1192
        %v1194 = vsel %vm621, %v1187, %v1191
        %v1195 = vsel %vm621, %v1189, %v1193
        %v1196 = vsel %vm621, %v1183, %v1187
        %v1197 = vsel %vm621, %v1185, %v1189
        %v1198 = vsel %vm621, %v1179, %v1183
        %v1199 = vsel %vm621, %v1181, %v1185
        %v1200 = vsel %vm621, %v1191, %v1179
        %v1201 = vsel %vm621, %v1193, %v1181
        %v1202 = vld [vmem:[%s5] ss:$8 sm:$0xf]
        %v1204 = vlaneseq
        %v1205 = vshrl.u32 %v1204, 7
        %v1206 = vsub.s32 0, %v1205
        %v1207 = vrot.slane %v1202, %v1206
        %v1208 = vlaneseq
        %v1209 = vshrl.u32 %v1208, 7
        %v1210 = vsub.s32 1, %v1209
        %v1211 = vrot.slane %v1202, %v1210
        %v1212 = vlaneseq
        %v1213 = vshrl.u32 %v1212, 7
        %v1214 = vsub.s32 2, %v1213
        %v1215 = vrot.slane %v1202, %v1214
        %v1216 = vlaneseq
        %v1217 = vshrl.u32 %v1216, 7
        %v1218 = vsub.s32 3, %v1217
        %v1219 = vrot.slane %v1202, %v1218
        %v1224 = vmul.f32 %v1200, %v1207
        %v1225 = vmul.f32 %v1198, %v1211
        %v1226 = vmul.f32 %v1196, %v1215
        %v1227 = vmul.f32 %v1194, %v1219
        %v1228 = vmul.f32 %v1201, %v1207
        %v1229 = vmul.f32 %v1199, %v1211
        %v1230 = vmul.f32 %v1197, %v1215
        %v1231 = vmul.f32 %v1195, %v1219
        %1232 = vst [vmem:[#allocation4] sm:$0xff] %v1224
        %1233 = vst [vmem:[#allocation4 + $0x8] sm:$0xff] %v1225
        %1234 = vst [vmem:[#allocation4 + $0x10] sm:$0xff] %v1226
        %1235 = vst [vmem:[#allocation4 + $0x18] sm:$0xff] %v1227
        %1236 = vst [vmem:[#allocation4 + $0x20] sm:$0xff] %v1228
        %1237 = vst [vmem:[#allocation4 + $0x28] sm:$0xff] %v1229
        %1238 = vst [vmem:[#allocation4 + $0x30] sm:$0xff] %v1230
        %1239 = vst [vmem:[#allocation4 + $0x38] sm:$0xff] %v1231
        %1240 = vrot.lane.b32.xlu0 %v1170, 16
        %v1241 = vpop.permute.xlu0 %1240
        %1242 = vrot.lane.b32.xlu0 %v1174, 16
        %v1243 = vpop.permute.xlu0 %1242
        %1244 = vrot.lane.b32.xlu0 %v1171, 16
        %v1245 = vpop.permute.xlu0 %1244
        %1246 = vrot.lane.b32.xlu0 %v1175, 16
        %v1247 = vpop.permute.xlu0 %1246
        %1248 = vrot.lane.b32.xlu0 %v1172, 16
        %v1249 = vpop.permute.xlu0 %1248
        %1250 = vrot.lane.b32.xlu0 %v1176, 16
        %v1251 = vpop.permute.xlu0 %1250
        %1252 = vrot.lane.b32.xlu0 %v1173, 16
        %v1253 = vpop.permute.xlu0 %1252
        %1254 = vrot.lane.b32.xlu0 %v1177, 16
        %v1255 = vpop.permute.xlu0 %1254
        %v1256 = vsel %vm664, %v1249, %v1253
        %v1257 = vsel %vm664, %v1251, %v1255
        %v1258 = vsel %vm664, %v1245, %v1249
        %v1259 = vsel %vm664, %v1247, %v1251
        %v1260 = vsel %vm664, %v1241, %v1245
        %v1261 = vsel %vm664, %v1243, %v1247
        %v1262 = vsel %vm664, %v1253, %v1241
        %v1263 = vsel %vm664, %v1255, %v1243
        %v1264 = vld [vmem:[%s669] ss:$8 sm:$0xf]
        %v1266 = vlaneseq
        %v1267 = vshrl.u32 %v1266, 7
        %v1268 = vsub.s32 0, %v1267
        %v1269 = vrot.slane %v1264, %v1268
        %v1270 = vlaneseq
        %v1271 = vshrl.u32 %v1270, 7
        %v1272 = vsub.s32 1, %v1271
        %v1273 = vrot.slane %v1264, %v1272
        %v1274 = vlaneseq
        %v1275 = vshrl.u32 %v1274, 7
        %v1276 = vsub.s32 2, %v1275
        %v1277 = vrot.slane %v1264, %v1276
        %v1278 = vlaneseq
        %v1279 = vshrl.u32 %v1278, 7
        %v1280 = vsub.s32 3, %v1279
        %v1281 = vrot.slane %v1264, %v1280
        %v1286 = vmul.f32 %v1262, %v1269
        %v1287 = vmul.f32 %v1260, %v1273
        %v1288 = vmul.f32 %v1258, %v1277
        %v1289 = vmul.f32 %v1256, %v1281
        %v1290 = vmul.f32 %v1263, %v1269
        %v1291 = vmul.f32 %v1261, %v1273
        %v1292 = vmul.f32 %v1259, %v1277
        %v1293 = vmul.f32 %v1257, %v1281
        %1294 = vst [vmem:[#allocation4 + $0x40] sm:$0xff] %v1286
        %1295 = vst [vmem:[#allocation4 + $0x48] sm:$0xff] %v1287
        %1296 = vst [vmem:[#allocation4 + $0x50] sm:$0xff] %v1288
        %1297 = vst [vmem:[#allocation4 + $0x58] sm:$0xff] %v1289
        %1298 = vst [vmem:[#allocation4 + $0x60] sm:$0xff] %v1290
        %1299 = vst [vmem:[#allocation4 + $0x68] sm:$0xff] %v1291
        %1300 = vst [vmem:[#allocation4 + $0x70] sm:$0xff] %v1292
        %1301 = vst [vmem:[#allocation4 + $0x78] sm:$0xff] %v1293
        %1302 = vrot.lane.b32.xlu0 %v1170, 15
        %v1303 = vpop.permute.xlu0 %1302
        %1304 = vrot.lane.b32.xlu0 %v1174, 15
        %v1305 = vpop.permute.xlu0 %1304
        %1306 = vrot.lane.b32.xlu0 %v1171, 15
        %v1307 = vpop.permute.xlu0 %1306
        %1308 = vrot.lane.b32.xlu0 %v1175, 15
        %v1309 = vpop.permute.xlu0 %1308
        %1310 = vrot.lane.b32.xlu0 %v1172, 15
        %v1311 = vpop.permute.xlu0 %1310
        %1312 = vrot.lane.b32.xlu0 %v1176, 15
        %v1313 = vpop.permute.xlu0 %1312
        %1314 = vrot.lane.b32.xlu0 %v1173, 15
        %v1315 = vpop.permute.xlu0 %1314
        %1316 = vrot.lane.b32.xlu0 %v1177, 15
        %v1317 = vpop.permute.xlu0 %1316
        %v1318 = vsel %vm720, %v1311, %v1315
        %v1319 = vsel %vm720, %v1313, %v1317
        %v1320 = vsel %vm720, %v1307, %v1311
        %v1321 = vsel %vm720, %v1309, %v1313
        %v1322 = vsel %vm720, %v1303, %v1307
        %v1323 = vsel %vm720, %v1305, %v1309
        %v1324 = vsel %vm720, %v1315, %v1303
        %v1325 = vsel %vm720, %v1317, %v1305
        %v1326 = vld [vmem:[%s725] ss:$8 sm:$0xf]
        %v1328 = vlaneseq
        %v1329 = vshrl.u32 %v1328, 7
        %v1330 = vsub.s32 0, %v1329
        %v1331 = vrot.slane %v1326, %v1330
        %v1332 = vlaneseq
        %v1333 = vshrl.u32 %v1332, 7
        %v1334 = vsub.s32 1, %v1333
        %v1335 = vrot.slane %v1326, %v1334
        %v1336 = vlaneseq
        %v1337 = vshrl.u32 %v1336, 7
        %v1338 = vsub.s32 2, %v1337
        %v1339 = vrot.slane %v1326, %v1338
        %v1340 = vlaneseq
        %v1341 = vshrl.u32 %v1340, 7
        %v1342 = vsub.s32 3, %v1341
        %v1343 = vrot.slane %v1326, %v1342
        %v1348 = vmul.f32 %v1324, %v1331
        %v1349 = vmul.f32 %v1322, %v1335
        %v1350 = vmul.f32 %v1320, %v1339
        %v1351 = vmul.f32 %v1318, %v1343
        %v1352 = vmul.f32 %v1325, %v1331
        %v1353 = vmul.f32 %v1323, %v1335
        %v1354 = vmul.f32 %v1321, %v1339
        %v1355 = vmul.f32 %v1319, %v1343
        %1356 = vst [vmem:[#allocation4 + $0x80] sm:$0xff] %v1348
        %1357 = vst [vmem:[#allocation4 + $0x88] sm:$0xff] %v1349
        %1358 = vst [vmem:[#allocation4 + $0x90] sm:$0xff] %v1350
        %1359 = vst [vmem:[#allocation4 + $0x98] sm:$0xff] %v1351
        %1360 = vst [vmem:[#allocation4 + $0xa0] sm:$0xff] %v1352
        %1361 = vst [vmem:[#allocation4 + $0xa8] sm:$0xff] %v1353
        %1362 = vst [vmem:[#allocation4 + $0xb0] sm:$0xff] %v1354
        %1363 = vst [vmem:[#allocation4 + $0xb8] sm:$0xff] %v1355
        %1364 = vrot.lane.b32.xlu0 %v1170, 1
        %v1365 = vpop.permute.xlu0 %1364
        %1366 = vrot.lane.b32.xlu0 %v1174, 1
        %v1367 = vpop.permute.xlu0 %1366
        %1368 = vrot.lane.b32.xlu0 %v1171, 1
        %v1369 = vpop.permute.xlu0 %1368
        %1370 = vrot.lane.b32.xlu0 %v1175, 1
        %v1371 = vpop.permute.xlu0 %1370
        %1372 = vrot.lane.b32.xlu0 %v1172, 1
        %v1373 = vpop.permute.xlu0 %1372
        %1374 = vrot.lane.b32.xlu0 %v1176, 1
        %v1375 = vpop.permute.xlu0 %1374
        %1376 = vrot.lane.b32.xlu0 %v1173, 1
        %v1377 = vpop.permute.xlu0 %1376
        %1378 = vrot.lane.b32.xlu0 %v1177, 1
        %v1379 = vpop.permute.xlu0 %1378
        %v1380 = vsel %vm764, %v1373, %v1377
        %v1381 = vsel %vm764, %v1375, %v1379
        %v1382 = vsel %vm764, %v1369, %v1373
        %v1383 = vsel %vm764, %v1371, %v1375
        %v1384 = vsel %vm764, %v1365, %v1369
        %v1385 = vsel %vm764, %v1367, %v1371
        %v1386 = vsel %vm764, %v1377, %v1365
        %v1387 = vsel %vm764, %v1379, %v1367
        %v1388 = vld [vmem:[%s769] ss:$8 sm:$0xf]
        %v1390 = vlaneseq
        %v1391 = vshrl.u32 %v1390, 7
        %v1392 = vsub.s32 0, %v1391
        %v1393 = vrot.slane %v1388, %v1392
        %v1394 = vlaneseq
        %v1395 = vshrl.u32 %v1394, 7
        %v1396 = vsub.s32 1, %v1395
        %v1397 = vrot.slane %v1388, %v1396
        %v1398 = vlaneseq
        %v1399 = vshrl.u32 %v1398, 7
        %v1400 = vsub.s32 2, %v1399
        %v1401 = vrot.slane %v1388, %v1400
        %v1402 = vlaneseq
        %v1403 = vshrl.u32 %v1402, 7
        %v1404 = vsub.s32 3, %v1403
        %v1405 = vrot.slane %v1388, %v1404
        %v1410 = vmul.f32 %v1386, %v1393
        %v1411 = vmul.f32 %v1384, %v1397
        %v1412 = vmul.f32 %v1382, %v1401
        %v1413 = vmul.f32 %v1380, %v1405
        %v1414 = vmul.f32 %v1387, %v1393
        %v1415 = vmul.f32 %v1385, %v1397
        %v1416 = vmul.f32 %v1383, %v1401
        %v1417 = vmul.f32 %v1381, %v1405
        %1418 = vst [vmem:[#allocation4 + $0xc0] sm:$0xff] %v1410
        %1419 = vst [vmem:[#allocation4 + $0xc8] sm:$0xff] %v1411
        %1420 = vst [vmem:[#allocation4 + $0xd0] sm:$0xff] %v1412
        %1421 = vst [vmem:[#allocation4 + $0xd8] sm:$0xff] %v1413
        %1422 = vst [vmem:[#allocation4 + $0xe0] sm:$0xff] %v1414
        %1423 = vst [vmem:[#allocation4 + $0xe8] sm:$0xff] %v1415
        %1424 = vst [vmem:[#allocation4 + $0xf0] sm:$0xff] %v1416
        %1425 = vst [vmem:[#allocation4 + $0xf8] sm:$0xff] %v1417
        %1426 = vst [vmem:[#allocation4 + $0x100] sm:$0xff] %v1170
        %1427 = vst [vmem:[#allocation4 + $0x108] sm:$0xff] %v1171
        %1428 = vst [vmem:[#allocation4 + $0x110] sm:$0xff] %v1172
        %1429 = vst [vmem:[#allocation4 + $0x118] sm:$0xff] %v1173
        %1430 = vst [vmem:[#allocation4 + $0x120] sm:$0xff] %v1174
        %1431 = vst [vmem:[#allocation4 + $0x128] sm:$0xff] %v1175
        %1432 = vst [vmem:[#allocation4 + $0x130] sm:$0xff] %v1176
        %1433 = vst [vmem:[#allocation4 + $0x138] sm:$0xff] %v1177
        %1434 = vrot.lane.b32.xlu0 %v1170, 127
        %v1435 = vpop.permute.xlu0 %1434
        %1436 = vrot.lane.b32.xlu0 %v1174, 127
        %v1437 = vpop.permute.xlu0 %1436
        %1438 = vrot.lane.b32.xlu0 %v1171, 127
        %v1439 = vpop.permute.xlu0 %1438
        %1440 = vrot.lane.b32.xlu0 %v1175, 127
        %v1441 = vpop.permute.xlu0 %1440
        %1442 = vrot.lane.b32.xlu0 %v1172, 127
        %v1443 = vpop.permute.xlu0 %1442
        %1444 = vrot.lane.b32.xlu0 %v1176, 127
        %v1445 = vpop.permute.xlu0 %1444
        %1446 = vrot.lane.b32.xlu0 %v1173, 127
        %v1447 = vpop.permute.xlu0 %1446
        %1448 = vrot.lane.b32.xlu0 %v1177, 127
        %v1449 = vpop.permute.xlu0 %1448
        %v1450 = vsel %vm824, %v1443, %v1447
        %v1451 = vsel %vm824, %v1445, %v1449
        %v1452 = vsel %vm824, %v1439, %v1443
        %v1453 = vsel %vm824, %v1441, %v1445
        %v1454 = vsel %vm824, %v1435, %v1439
        %v1455 = vsel %vm824, %v1437, %v1441
        %v1456 = vsel %vm824, %v1447, %v1435
        %v1457 = vsel %vm824, %v1449, %v1437
        %v1458 = vld [vmem:[%s829] ss:$8 sm:$0xf]
        %v1460 = vlaneseq
        %v1461 = vshrl.u32 %v1460, 7
        %v1462 = vsub.s32 0, %v1461
        %v1463 = vrot.slane %v1458, %v1462
        %v1464 = vlaneseq
        %v1465 = vshrl.u32 %v1464, 7
        %v1466 = vsub.s32 1, %v1465
        %v1467 = vrot.slane %v1458, %v1466
        %v1468 = vlaneseq
        %v1469 = vshrl.u32 %v1468, 7
        %v1470 = vsub.s32 2, %v1469
        %v1471 = vrot.slane %v1458, %v1470
        %v1472 = vlaneseq
        %v1473 = vshrl.u32 %v1472, 7
        %v1474 = vsub.s32 3, %v1473
        %v1475 = vrot.slane %v1458, %v1474
        %v1480 = vmul.f32 %v1454, %v1463
        %v1481 = vmul.f32 %v1452, %v1467
        %v1482 = vmul.f32 %v1450, %v1471
        %v1483 = vmul.f32 %v1456, %v1475
        %v1484 = vmul.f32 %v1455, %v1463
        %v1485 = vmul.f32 %v1453, %v1467
        %v1486 = vmul.f32 %v1451, %v1471
        %v1487 = vmul.f32 %v1457, %v1475
        %1488 = vst [vmem:[#allocation4 + $0x140] sm:$0xff] %v1480
        %1489 = vst [vmem:[#allocation4 + $0x148] sm:$0xff] %v1481
        %1490 = vst [vmem:[#allocation4 + $0x150] sm:$0xff] %v1482
        %1491 = vst [vmem:[#allocation4 + $0x158] sm:$0xff] %v1483
        %1492 = vst [vmem:[#allocation4 + $0x160] sm:$0xff] %v1484
        %1493 = vst [vmem:[#allocation4 + $0x168] sm:$0xff] %v1485
        %1494 = vst [vmem:[#allocation4 + $0x170] sm:$0xff] %v1486
        %1495 = vst [vmem:[#allocation4 + $0x178] sm:$0xff] %v1487
        %1496 = vrot.lane.b32.xlu0 %v1170, 113
        %v1497 = vpop.permute.xlu0 %1496
        %1498 = vrot.lane.b32.xlu0 %v1174, 113
        %v1499 = vpop.permute.xlu0 %1498
        %1500 = vrot.lane.b32.xlu0 %v1171, 113
        %v1501 = vpop.permute.xlu0 %1500
        %1502 = vrot.lane.b32.xlu0 %v1175, 113
        %v1503 = vpop.permute.xlu0 %1502
        %1504 = vrot.lane.b32.xlu0 %v1172, 113
        %v1505 = vpop.permute.xlu0 %1504
        %1506 = vrot.lane.b32.xlu0 %v1176, 113
        %v1507 = vpop.permute.xlu0 %1506
        %1508 = vrot.lane.b32.xlu0 %v1173, 113
        %v1509 = vpop.permute.xlu0 %1508
        %1510 = vrot.lane.b32.xlu0 %v1177, 113
        %v1511 = vpop.permute.xlu0 %1510
        %v1512 = vsel %vm880, %v1505, %v1509
        %v1513 = vsel %vm880, %v1507, %v1511
        %v1514 = vsel %vm880, %v1501, %v1505
        %v1515 = vsel %vm880, %v1503, %v1507
        %v1516 = vsel %vm880, %v1497, %v1501
        %v1517 = vsel %vm880, %v1499, %v1503
        %v1518 = vsel %vm880, %v1509, %v1497
        %v1519 = vsel %vm880, %v1511, %v1499
        %v1520 = vld [vmem:[%s885] ss:$8 sm:$0xf]
        %v1522 = vlaneseq
        %v1523 = vshrl.u32 %v1522, 7
        %v1524 = vsub.s32 0, %v1523
        %v1525 = vrot.slane %v1520, %v1524
        %v1526 = vlaneseq
        %v1527 = vshrl.u32 %v1526, 7
        %v1528 = vsub.s32 1, %v1527
        %v1529 = vrot.slane %v1520, %v1528
        %v1530 = vlaneseq
        %v1531 = vshrl.u32 %v1530, 7
        %v1532 = vsub.s32 2, %v1531
        %v1533 = vrot.slane %v1520, %v1532
        %v1534 = vlaneseq
        %v1535 = vshrl.u32 %v1534, 7
        %v1536 = vsub.s32 3, %v1535
        %v1537 = vrot.slane %v1520, %v1536
        %v1542 = vmul.f32 %v1516, %v1525
        %v1543 = vmul.f32 %v1514, %v1529
        %v1544 = vmul.f32 %v1512, %v1533
        %v1545 = vmul.f32 %v1518, %v1537
        %v1546 = vmul.f32 %v1517, %v1525
        %v1547 = vmul.f32 %v1515, %v1529
        %v1548 = vmul.f32 %v1513, %v1533
        %v1549 = vmul.f32 %v1519, %v1537
        %1550 = vst [vmem:[#allocation4 + $0x180] sm:$0xff] %v1542
        %1551 = vst [vmem:[#allocation4 + $0x188] sm:$0xff] %v1543
        %1552 = vst [vmem:[#allocation4 + $0x190] sm:$0xff] %v1544
        %1553 = vst [vmem:[#allocation4 + $0x198] sm:$0xff] %v1545
        %1554 = vst [vmem:[#allocation4 + $0x1a0] sm:$0xff] %v1546
        %1555 = vst [vmem:[#allocation4 + $0x1a8] sm:$0xff] %v1547
        %1556 = vst [vmem:[#allocation4 + $0x1b0] sm:$0xff] %v1548
        %1557 = vst [vmem:[#allocation4 + $0x1b8] sm:$0xff] %v1549
        %1558 = vrot.lane.b32.xlu0 %v1170, 112
        %v1559 = vpop.permute.xlu0 %1558
        %1560 = vrot.lane.b32.xlu0 %v1174, 112
        %v1561 = vpop.permute.xlu0 %1560
        %1562 = vrot.lane.b32.xlu0 %v1171, 112
        %v1563 = vpop.permute.xlu0 %1562
        %1564 = vrot.lane.b32.xlu0 %v1175, 112
        %v1565 = vpop.permute.xlu0 %1564
        %1566 = vrot.lane.b32.xlu0 %v1172, 112
        %v1567 = vpop.permute.xlu0 %1566
        %1568 = vrot.lane.b32.xlu0 %v1176, 112
        %v1569 = vpop.permute.xlu0 %1568
        %1570 = vrot.lane.b32.xlu0 %v1173, 112
        %v1571 = vpop.permute.xlu0 %1570
        %1572 = vrot.lane.b32.xlu0 %v1177, 112
        %v1573 = vpop.permute.xlu0 %1572
        %v1574 = vsel %vm924, %v1567, %v1571
        %v1575 = vsel %vm924, %v1569, %v1573
        %v1576 = vsel %vm924, %v1563, %v1567
        %v1577 = vsel %vm924, %v1565, %v1569
        %v1578 = vsel %vm924, %v1559, %v1563
        %v1579 = vsel %vm924, %v1561, %v1565
        %v1580 = vsel %vm924, %v1571, %v1559
        %v1581 = vsel %vm924, %v1573, %v1561
        %v1582 = vld [vmem:[%s929] ss:$8 sm:$0xf]
        %v1584 = vlaneseq
        %v1585 = vshrl.u32 %v1584, 7
        %v1586 = vsub.s32 0, %v1585
        %v1587 = vrot.slane %v1582, %v1586
        %v1588 = vlaneseq
        %v1589 = vshrl.u32 %v1588, 7
        %v1590 = vsub.s32 1, %v1589
        %v1591 = vrot.slane %v1582, %v1590
        %v1592 = vlaneseq
        %v1593 = vshrl.u32 %v1592, 7
        %v1594 = vsub.s32 2, %v1593
        %v1595 = vrot.slane %v1582, %v1594
        %v1596 = vlaneseq
        %v1597 = vshrl.u32 %v1596, 7
        %v1598 = vsub.s32 3, %v1597
        %v1599 = vrot.slane %v1582, %v1598
        %v1604 = vmul.f32 %v1578, %v1587
        %v1605 = vmul.f32 %v1576, %v1591
        %v1606 = vmul.f32 %v1574, %v1595
        %v1607 = vmul.f32 %v1580, %v1599
        %v1608 = vmul.f32 %v1579, %v1587
        %v1609 = vmul.f32 %v1577, %v1591
        %v1610 = vmul.f32 %v1575, %v1595
        %v1611 = vmul.f32 %v1581, %v1599
        %1612 = vst [vmem:[#allocation4 + $0x1c0] sm:$0xff] %v1604
        %1613 = vst [vmem:[#allocation4 + $0x1c8] sm:$0xff] %v1605
        %1614 = vst [vmem:[#allocation4 + $0x1d0] sm:$0xff] %v1606
        %1615 = vst [vmem:[#allocation4 + $0x1d8] sm:$0xff] %v1607
        %1616 = vst [vmem:[#allocation4 + $0x1e0] sm:$0xff] %v1608
        %1617 = vst [vmem:[#allocation4 + $0x1e8] sm:$0xff] %v1609
        %1618 = vst [vmem:[#allocation4 + $0x1f0] sm:$0xff] %v1610
        %1619 = vst [vmem:[#allocation4 + $0x1f8] sm:$0xff] %v1611
        %1620 = vrot.lane.b32.xlu0 %v1170, 111
        %v1621 = vpop.permute.xlu0 %1620
        %1622 = vrot.lane.b32.xlu0 %v1174, 111
        %v1623 = vpop.permute.xlu0 %1622
        %1624 = vrot.lane.b32.xlu0 %v1171, 111
        %v1625 = vpop.permute.xlu0 %1624
        %1626 = vrot.lane.b32.xlu0 %v1175, 111
        %v1627 = vpop.permute.xlu0 %1626
        %1628 = vrot.lane.b32.xlu0 %v1172, 111
        %v1629 = vpop.permute.xlu0 %1628
        %1630 = vrot.lane.b32.xlu0 %v1176, 111
        %v1631 = vpop.permute.xlu0 %1630
        %1632 = vrot.lane.b32.xlu0 %v1173, 111
        %v1633 = vpop.permute.xlu0 %1632
        %1634 = vrot.lane.b32.xlu0 %v1177, 111
        %v1635 = vpop.permute.xlu0 %1634
        %v1636 = vsel %vm980, %v1629, %v1633
        %v1637 = vsel %vm980, %v1631, %v1635
        %v1638 = vsel %vm980, %v1625, %v1629
        %v1639 = vsel %vm980, %v1627, %v1631
        %v1640 = vsel %vm980, %v1621, %v1625
        %v1641 = vsel %vm980, %v1623, %v1627
        %v1642 = vsel %vm980, %v1633, %v1621
        %v1643 = vsel %vm980, %v1635, %v1623
        %v1644 = vld [vmem:[%s985] ss:$8 sm:$0xf]
        %v1646 = vlaneseq
        %v1647 = vshrl.u32 %v1646, 7
        %v1648 = vsub.s32 0, %v1647
        %v1649 = vrot.slane %v1644, %v1648
        %v1650 = vlaneseq
        %v1651 = vshrl.u32 %v1650, 7
        %v1652 = vsub.s32 1, %v1651
        %v1653 = vrot.slane %v1644, %v1652
        %v1654 = vlaneseq
        %v1655 = vshrl.u32 %v1654, 7
        %v1656 = vsub.s32 2, %v1655
        %v1657 = vrot.slane %v1644, %v1656
        %v1658 = vlaneseq
        %v1659 = vshrl.u32 %v1658, 7
        %v1660 = vsub.s32 3, %v1659
        %v1661 = vrot.slane %v1644, %v1660
        %v1666 = vmul.f32 %v1640, %v1649
        %v1667 = vmul.f32 %v1638, %v1653
        %v1668 = vmul.f32 %v1636, %v1657
        %v1669 = vmul.f32 %v1642, %v1661
        %v1670 = vmul.f32 %v1641, %v1649
        %v1671 = vmul.f32 %v1639, %v1653
        %v1672 = vmul.f32 %v1637, %v1657
        %v1673 = vmul.f32 %v1643, %v1661
        %1674 = vst [vmem:[#allocation4 + $0x200] sm:$0xff] %v1666
        %1675 = vst [vmem:[#allocation4 + $0x208] sm:$0xff] %v1667
        %1676 = vst [vmem:[#allocation4 + $0x210] sm:$0xff] %v1668
        %1677 = vst [vmem:[#allocation4 + $0x218] sm:$0xff] %v1669
        %1678 = vst [vmem:[#allocation4 + $0x220] sm:$0xff] %v1670
        %1679 = vst [vmem:[#allocation4 + $0x228] sm:$0xff] %v1671
        %1680 = vst [vmem:[#allocation4 + $0x230] sm:$0xff] %v1672
        %1681 = vst [vmem:[#allocation4 + $0x238] sm:$0xff] %v1673
        %v1682 = vld [vmem:[%s456] sm:$0xf]
        %v1683 = vld [vmem:[#allocation4] sm:$0xff]
        %v1684 = vld [vmem:[#allocation4 + $0x8] sm:$0xff]
        %v1685 = vld [vmem:[#allocation4 + $0x10] sm:$0xff]
        %v1686 = vld [vmem:[#allocation4 + $0x18] sm:$0xff]
        %v1687 = vld [vmem:[#allocation4 + $0x20] sm:$0xff]
        %v1688 = vld [vmem:[#allocation4 + $0x28] sm:$0xff]
        %v1689 = vld [vmem:[#allocation4 + $0x30] sm:$0xff]
        %v1690 = vld [vmem:[#allocation4 + $0x38] sm:$0xff]
        %v1691 = vld [vmem:[#allocation4 + $0x40] sm:$0xff]
        %v1692 = vld [vmem:[#allocation4 + $0x48] sm:$0xff]
        %v1693 = vld [vmem:[#allocation4 + $0x50] sm:$0xff]
        %v1694 = vld [vmem:[#allocation4 + $0x58] sm:$0xff]
        %v1695 = vld [vmem:[#allocation4 + $0x60] sm:$0xff]
        %v1696 = vld [vmem:[#allocation4 + $0x68] sm:$0xff]
        %v1697 = vld [vmem:[#allocation4 + $0x70] sm:$0xff]
        %v1698 = vld [vmem:[#allocation4 + $0x78] sm:$0xff]
        %v1699 = vld [vmem:[#allocation4 + $0x80] sm:$0xff]
        %v1700 = vld [vmem:[#allocation4 + $0x88] sm:$0xff]
        %v1701 = vld [vmem:[#allocation4 + $0x90] sm:$0xff]
        %v1702 = vld [vmem:[#allocation4 + $0x98] sm:$0xff]
        %v1703 = vld [vmem:[#allocation4 + $0xa0] sm:$0xff]
        %v1704 = vld [vmem:[#allocation4 + $0xa8] sm:$0xff]
        %v1705 = vld [vmem:[#allocation4 + $0xb0] sm:$0xff]
        %v1706 = vld [vmem:[#allocation4 + $0xb8] sm:$0xff]
        %v1707 = vld [vmem:[#allocation4 + $0xc0] sm:$0xff]
        %v1708 = vld [vmem:[#allocation4 + $0xc8] sm:$0xff]
        %v1709 = vld [vmem:[#allocation4 + $0xd0] sm:$0xff]
        %v1710 = vld [vmem:[#allocation4 + $0xd8] sm:$0xff]
        %v1711 = vld [vmem:[#allocation4 + $0xe0] sm:$0xff]
        %v1712 = vld [vmem:[#allocation4 + $0xe8] sm:$0xff]
        %v1713 = vld [vmem:[#allocation4 + $0xf0] sm:$0xff]
        %v1714 = vld [vmem:[#allocation4 + $0xf8] sm:$0xff]
        %v1715 = vld [vmem:[#allocation4 + $0x100] sm:$0xff]
        %v1716 = vld [vmem:[#allocation4 + $0x108] sm:$0xff]
        %v1717 = vld [vmem:[#allocation4 + $0x110] sm:$0xff]
        %v1718 = vld [vmem:[#allocation4 + $0x118] sm:$0xff]
        %v1719 = vld [vmem:[#allocation4 + $0x120] sm:$0xff]
        %v1720 = vld [vmem:[#allocation4 + $0x128] sm:$0xff]
        %v1721 = vld [vmem:[#allocation4 + $0x130] sm:$0xff]
        %v1722 = vld [vmem:[#allocation4 + $0x138] sm:$0xff]
        %v1723 = vld [vmem:[#allocation4 + $0x140] sm:$0xff]
        %v1724 = vld [vmem:[#allocation4 + $0x148] sm:$0xff]
        %v1725 = vld [vmem:[#allocation4 + $0x150] sm:$0xff]
        %v1726 = vld [vmem:[#allocation4 + $0x158] sm:$0xff]
        %v1727 = vld [vmem:[#allocation4 + $0x160] sm:$0xff]
        %v1728 = vld [vmem:[#allocation4 + $0x168] sm:$0xff]
        %v1729 = vld [vmem:[#allocation4 + $0x170] sm:$0xff]
        %v1730 = vld [vmem:[#allocation4 + $0x178] sm:$0xff]
        %v1731 = vld [vmem:[#allocation4 + $0x180] sm:$0xff]
        %v1732 = vld [vmem:[#allocation4 + $0x188] sm:$0xff]
        %v1733 = vld [vmem:[#allocation4 + $0x190] sm:$0xff]
        %v1734 = vld [vmem:[#allocation4 + $0x198] sm:$0xff]
        %v1735 = vld [vmem:[#allocation4 + $0x1a0] sm:$0xff]
        %v1736 = vld [vmem:[#allocation4 + $0x1a8] sm:$0xff]
        %v1737 = vld [vmem:[#allocation4 + $0x1b0] sm:$0xff]
        %v1738 = vld [vmem:[#allocation4 + $0x1b8] sm:$0xff]
        %v1739 = vld [vmem:[#allocation4 + $0x1c0] sm:$0xff]
        %v1740 = vld [vmem:[#allocation4 + $0x1c8] sm:$0xff]
        %v1741 = vld [vmem:[#allocation4 + $0x1d0] sm:$0xff]
        %v1742 = vld [vmem:[#allocation4 + $0x1d8] sm:$0xff]
        %v1743 = vld [vmem:[#allocation4 + $0x1e0] sm:$0xff]
        %v1744 = vld [vmem:[#allocation4 + $0x1e8] sm:$0xff]
        %v1745 = vld [vmem:[#allocation4 + $0x1f0] sm:$0xff]
        %v1746 = vld [vmem:[#allocation4 + $0x1f8] sm:$0xff]
        %v1747 = vld [vmem:[#allocation4 + $0x200] sm:$0xff]
        %v1748 = vld [vmem:[#allocation4 + $0x208] sm:$0xff]
        %v1749 = vld [vmem:[#allocation4 + $0x210] sm:$0xff]
        %v1750 = vld [vmem:[#allocation4 + $0x218] sm:$0xff]
        %v1751 = vld [vmem:[#allocation4 + $0x220] sm:$0xff]
        %v1752 = vld [vmem:[#allocation4 + $0x228] sm:$0xff]
        %v1753 = vld [vmem:[#allocation4 + $0x230] sm:$0xff]
        %v1754 = vld [vmem:[#allocation4 + $0x238] sm:$0xff]
        %v1755 = vpack.c.bf16 %v1687, %v1683
        %v1756 = vpack.c.bf16 %v1688, %v1684
        %v1757 = vpack.c.bf16 %v1689, %v1685
        %v1758 = vpack.c.bf16 %v1690, %v1686
        %v1759 = vpack.c.bf16 %v1695, %v1691
        %v1760 = vpack.c.bf16 %v1696, %v1692
        %v1761 = vpack.c.bf16 %v1697, %v1693
        %v1762 = vpack.c.bf16 %v1698, %v1694
        %v1763 = vpack.c.bf16 %v1703, %v1699
        %v1764 = vpack.c.bf16 %v1704, %v1700
        %v1765 = vpack.c.bf16 %v1705, %v1701
        %v1766 = vpack.c.bf16 %v1706, %v1702
        %v1767 = vpack.c.bf16 %v1711, %v1707
        %v1768 = vpack.c.bf16 %v1712, %v1708
        %v1769 = vpack.c.bf16 %v1713, %v1709
        %v1770 = vpack.c.bf16 %v1714, %v1710
        %v1771 = vpack.c.bf16 %v1719, %v1715
        %v1772 = vpack.c.bf16 %v1720, %v1716
        %v1773 = vpack.c.bf16 %v1721, %v1717
        %v1774 = vpack.c.bf16 %v1722, %v1718
        %v1775 = vpack.c.bf16 %v1727, %v1723
        %v1776 = vpack.c.bf16 %v1728, %v1724
        %v1777 = vpack.c.bf16 %v1729, %v1725
        %v1778 = vpack.c.bf16 %v1730, %v1726
        %v1779 = vpack.c.bf16 %v1735, %v1731
        %v1780 = vpack.c.bf16 %v1736, %v1732
        %v1781 = vpack.c.bf16 %v1737, %v1733
        %v1782 = vpack.c.bf16 %v1738, %v1734
        %v1783 = vpack.c.bf16 %v1743, %v1739
        %v1784 = vpack.c.bf16 %v1744, %v1740
        %v1785 = vpack.c.bf16 %v1745, %v1741
        %v1786 = vpack.c.bf16 %v1746, %v1742
        %v1787 = vpack.c.bf16 %v1751, %v1747
        %v1788 = vpack.c.bf16 %v1752, %v1748
        %v1789 = vpack.c.bf16 %v1753, %v1749
        %v1790 = vpack.c.bf16 %v1754, %v1750
        %v1791 = vld [vmem:[%s460] sm:$0xf]
        %1793 = vset.pattern.permute.xlu0 0
        %1794 = vperm.xlu0 %1793, %v1791
        %v1795 = vpop.permute.xlu0 %1794
        %v1799 = vunpack.c.l.s4 1983009808
        %v1800 = vunpack.c.0.s8 %v1799
        %v1801 = vlaneseq
        %v1802 = vshrl.u32 %v1801, 7
        %v1803 = vsub.s32 %v1800, %v1802
        %v1804 = vrot.slane %v1682, %v1803
        %v1805 = vcombine.high %v1804, %v1804
        %vm1807 = vcmask 130048
        %v1809 = vsel %vm1807, %v1805, 0
        %1811 = vmatprep.subr.bf16.mxu0 %v1784
        %1812 = vmatpush1.bf16.msra.mxu0 %v1783
        %1813 = vmatprep.subr.bf16.mxu0 %v1780
        %1814 = vmatpush1.bf16.msra.mxu0 %v1779
        %1815 = vmatprep.subr.bf16.mxu0 %v1776
        %1816 = vmatpush1.bf16.msra.mxu0 %v1775
        %1817 = vmatprep.subr.bf16.mxu0 %v1772
        %1818 = vmatpush1.bf16.msra.mxu0 %v1771
        %1819 = vmatprep.subr.bf16.mxu0 %v1768
        %1820 = vmatpush1.bf16.msra.mxu0 %v1767
        %1821 = vmatprep.subr.bf16.mxu0 %v1764
        %1822 = vmatpush1.bf16.msra.mxu0 %v1763
        %1823 = vmatprep.subr.bf16.mxu0 %v1760
        %1824 = vmatpush1.bf16.msra.mxu0 %v1759
        %1825 = vmatprep.subr.bf16.mxu0 %v1756
        %1826 = vmatpush1.bf16.msra.mxu0 %v1755
        %1827 = vmatprep.subr.bf16.mxu0 0
        %1828 = vmatpush2.bf16.msra.mxu0 0
        %1829 = vmatprep.subr.bf16.mxu0 0
        %1830 = vmatpush2.bf16.msra.mxu0 0
        %1831 = vmatprep.subr.bf16.mxu0 0
        %1832 = vmatpush2.bf16.msra.mxu0 0
        %1833 = vmatprep.subr.bf16.mxu0 0
        %1834 = vmatpush2.bf16.msra.mxu0 0
        %1835 = vmatprep.subr.bf16.mxu0 0
        %1836 = vmatpush2.bf16.msra.mxu0 0
        %1837 = vmatprep.subr.bf16.mxu0 0
        %1838 = vmatpush2.bf16.msra.mxu0 0
        %1839 = vmatprep.subr.bf16.mxu0 0
        %1840 = vmatpush2.bf16.msra.mxu0 0
        %1841 = vmatprep.subr.bf16.mxu0 %v1788
        %1842 = vmatpush2.bf16.msra.mxu0 %v1787
        %1843 = vmatprep.mubr.bf16.mxu0 %v1809
        %1844 = vmatmul.mubr.bf16.gmra.mxu0 %v1804
        %v1845 = vpop.f32.mrf.mxu0
        %v1846 = vadd.f32 %v1795, %v1845
        %v1847 = vpop.f32.mrf.mxu0
        %v1848 = vadd.f32 %v1795, %v1847
        %v1849 = vpop.f32.mrf.mxu0
        %v1850 = vpop.f32.mrf.mxu0
        %1851 = vdwg.mxu0
        %1852 = vmatprep.subr.bf16.mxu0 %v1786
        %1853 = vmatpush1.bf16.msra.mxu0 %v1785
        %1854 = vmatprep.subr.bf16.mxu0 %v1782
        %1855 = vmatpush1.bf16.msra.mxu0 %v1781
        %1856 = vmatprep.subr.bf16.mxu0 %v1778
        %1857 = vmatpush1.bf16.msra.mxu0 %v1777
        %1858 = vmatprep.subr.bf16.mxu0 %v1774
        %1859 = vmatpush1.bf16.msra.mxu0 %v1773
        %1860 = vmatprep.subr.bf16.mxu0 %v1770
        %1861 = vmatpush1.bf16.msra.mxu0 %v1769
        %1862 = vmatprep.subr.bf16.mxu0 %v1766
        %1863 = vmatpush1.bf16.msra.mxu0 %v1765
        %1864 = vmatprep.subr.bf16.mxu0 %v1762
        %1865 = vmatpush1.bf16.msra.mxu0 %v1761
        %1866 = vmatprep.subr.bf16.mxu0 %v1758
        %1867 = vmatpush1.bf16.msra.mxu0 %v1757
        %1868 = vmatprep.subr.bf16.mxu0 0
        %1869 = vmatpush2.bf16.msra.mxu0 0
        %1870 = vmatprep.subr.bf16.mxu0 0
        %1871 = vmatpush2.bf16.msra.mxu0 0
        %1872 = vmatprep.subr.bf16.mxu0 0
        %1873 = vmatpush2.bf16.msra.mxu0 0
        %1874 = vmatprep.subr.bf16.mxu0 0
        %1875 = vmatpush2.bf16.msra.mxu0 0
        %1876 = vmatprep.subr.bf16.mxu0 0
        %1877 = vmatpush2.bf16.msra.mxu0 0
        %1878 = vmatprep.subr.bf16.mxu0 0
        %1879 = vmatpush2.bf16.msra.mxu0 0
        %1880 = vmatprep.subr.bf16.mxu0 0
        %1881 = vmatpush2.bf16.msra.mxu0 0
        %1882 = vmatprep.subr.bf16.mxu0 %v1790
        %1883 = vmatpush2.bf16.msra.mxu0 %v1789
        %1884 = vmatprep.mubr.bf16.mxu0 %v1809
        %1885 = vmatmul.mubr.bf16.gmra.mxu0 %v1804
        %v1886 = vpop.f32.mrf.mxu0
        %v1887 = vadd.f32 %v1795, %v1886
        %v1888 = vpop.f32.mrf.mxu0
        %v1889 = vadd.f32 %v1795, %v1888
        %v1890 = vpop.f32.mrf.mxu0
        %v1891 = vpop.f32.mrf.mxu0
        %1892 = vdwg.mxu0
        %v1897 = vcombine.low %v1846, %v1848
        %v1898 = vcombine.low %v1887, %v1889
        %v1901 = vadd.f32 %v603, %v1897
        %v1902 = vadd.f32 %v604, %v1898
        %1903 = vst [vmem:[#allocation2] sm:$0xff] %v1901
        %1904 = vst [vmem:[#allocation2 + $0x8] sm:$0xff] %v1902
        %1905 = vst [vmem:[%s465] sm:$0xff] %v1901
        %1906 = vst [vmem:[%s465 + $0x8] sm:$0xff] %v1902
        %1907 = vst [vmem:[%s470] sm:$0xff] %v1897
        %1908 = vst [vmem:[%s470 + $0x8] sm:$0xff] %v1898
        %p1909 = scmp.lt.s32.totalorder %s24, 2
        %s1910 = scalar_select %p1909, %s24, 2
        %s1911 = smul.addr %s1910, 4
        %s1912 = smul.addr %s1911, 4
        %s1913 = scalar_lea.vmem %s10, %s1912
        %p1914 = scmp.lt.s32.totalorder %s24, 2
        %s1915 = scalar_select %p1914, %s24, 2
        %s1916 = smul.addr %s1915, 4
        %s1917 = smul.addr %s1916, 4
        %s1918 = scalar_lea.vmem %s11, %s1917
        // Predicated region
        $region69: #{end2end_forward.1} parent=59 // pred_check
          %p1919 = pneg %p272
        $region70: #{end2end_forward.1} parent=59 // pred_check_branch
          %1921 = sbr.rel (%p1919) target = $region72
        $region71: #{end2end_forward.1} parent=59 // pred_region
          _
        $region72: #{end2end_forward.1} parent=59 // pred_fallthru
          _
        // Predicated region
        $region73: #{end2end_forward.1} parent=59 // pred_check
          %p1922 = pneg %p298
        $region74: #{end2end_forward.1} parent=59 // pred_check_branch
          %1924 = sbr.rel (%p1922) target = $region76
        $region75: #{end2end_forward.1} parent=59 // pred_region
          _
        $region76: #{end2end_forward.1} parent=59 // pred_fallthru
          _
      $region60: #{end2end_forward.1} parent=5 // pred_fallthru
        _
      %p1925 = scmp.le.s32.totalorder 2, %s19
      // Predicated region
      $region77: #{end2end_forward.1} parent=5 // pred_check
        %p1926 = pneg %p1925
      $region78: #{end2end_forward.1} parent=5 // pred_check_branch
        %1928 = sbr.rel (%p1926) target = $region80
      $region79: #{end2end_forward.1} parent=5 // pred_region
        %s1929 = ssub.s32 %s19, 2
        // Predicated region
        $region81: #{end2end_forward.1} parent=79 // pred_check
          %p1930 = pneg %p278
        $region82: #{end2end_forward.1} parent=79 // pred_check_branch
          %1932 = sbr.rel (%p1930) target = $region84
        $region83: #{end2end_forward.1} parent=79 // pred_region
          %p1933 = scmp.lt.s32.totalorder %s25, 2
          %s1934 = scalar_select %p1933, %s25, 2
          %s1935 = smul.addr %s1934, 4
          %s1936 = smul.addr %s1935, 4
          %s1937 = scalar_lea.vmem %s10, %s1936
        $region84: #{end2end_forward.1} parent=79 // pred_fallthru
          _
        // Predicated region
        $region85: #{end2end_forward.1} parent=79 // pred_check
          %p1938 = pneg %p304
        $region86: #{end2end_forward.1} parent=79 // pred_check_branch
          %1940 = sbr.rel (%p1938) target = $region88
        $region87: #{end2end_forward.1} parent=79 // pred_region
          %p1941 = scmp.lt.s32.totalorder %s25, 2
          %s1942 = scalar_select %p1941, %s25, 2
          %s1943 = smul.addr %s1942, 4
          %s1944 = smul.addr %s1943, 4
          %s1945 = scalar_lea.vmem %s11, %s1944
        $region88: #{end2end_forward.1} parent=79 // pred_fallthru
          _
      $region80: #{end2end_forward.1} parent=5 // pred_fallthru
        _
    $region6: #{end2end_forward.1} parent=1 // loop_footer
      %s23 = sadd.s32 1, %s19
    $region7: #{end2end_forward.1} parent=1 // loop_footer_branch
      %18 = sbr.rel target = $region3
    $region8: #{end2end_forward.1} parent=1 // loop_exit
      _
    %1946 = vsyncpa [#allocation6], 1
    %s1947 = scalar_lea.sflag [#allocation6], 1
    %1948 = vsyncpa %s1947, 1

</llo_original>
